<compile_context>
chip_gen: v5e
topology: v5e:2x2
jax: 0.10.0
libtpu: 0.0.40
codegen_flags: <defaults>
</compile_context>

<pallas_src>
import functools

import jax
import jax.numpy as jnp
from jax.experimental import pallas as pl
from jax.experimental.pallas import tpu as pltpu

BN_EPS = 1e-5
LANE = 128


def _round_up(x, m):
    return (x + m - 1) // m * m


def _vmem_cap_bytes():
    try:
        return int(pltpu.get_tpu_info().vmem_capacity_bytes * 3 // 4)
    except Exception:  # CPU trace / older API -> conservative default
        return 96 << 20


def _pick_tile_rows(H, W, cinp, coutp, budget_bytes):
    """Largest divisor of H whose per-step working set fits the budget."""
    wp8 = _round_up(W + 2, 8)
    per_row = (2 * wp8 * coutp * 4      # f32 accumulator + matmul temp
               + 2 * wp8 * cinp * 4     # activation temps
               + 2 * W * coutp * 2)     # bf16 y out block (double buffered)
    th = max(1, min(H, budget_bytes // max(per_row, 1)))
    while H % th:
        th -= 1
    return th


def _pick_flat_rows(m, target=2048):
    """Large lane-dense row tile for the streaming BN+ReLU pass."""
    if m <= target:
        return m
    t = min(target, m)
    for cand in range(t - t % 8, 7, -8):
        if m % cand == 0:
            return cand
    return m


# ---------------------------------------------------------------------------
# Fused kernel: [BN+ReLU of previous stage] -> 3x3 conv -> raw bf16 output
#               + per-tile BN partial stats (sum, centered sum-of-squares).
# ---------------------------------------------------------------------------
def conv_bn_act_stats_kernel(x_ref, w_ref, a_ref, c_ref, y_ref, stats_ref,
                             *, kh, kw, H, W, apply_act):
    # x_ref:     (hpad, wp8, cinp)    bf16  spatially zero-padded image: raw
    #                                       conv output of the previous stage,
    #                                       or the network input for stage 1.
    # w_ref:     (kh*kw, cinp, coutp) bf16
    # a_ref/c_ref: (1, cinp)          f32   previous stage's folded BN affine.
    # y_ref:     (th, W, coutp)       bf16  raw (pre-BN) conv output tile.
    # stats_ref: (2, coutp)           f32   [sum ; centered sum-of-squares].
    th, _, coutp = y_ref.shape
    _, wp8, cinp = x_ref.shape
    mrows = th * wp8
    row0 = pl.multiple_of(pl.program_id(1) * th, th)

    acc = None
    for dy in range(kh):
        slab = x_ref[pl.ds(row0 + dy, th), :, :]           # (th, wp8, cinp)
        if apply_act:
            # Fused BN(prev) + ReLU in f32.  The zero halo of the padded raw-y
            # buffer would turn into relu(c) under the affine -> mask it back
            # to zero (rows/cols outside [1, H] x [1, W] in padded coords).
            ri = jax.lax.broadcasted_iota(jnp.int32, (th, wp8), 0) + (row0 + dy)
            ci = jax.lax.broadcasted_iota(jnp.int32, (th, wp8), 1)
            interior = ((ri >= 1) & (ri <= H) & (ci >= 1) & (ci <= W))[:, :, None]
            act = jnp.maximum(
                slab.astype(jnp.float32) * a_ref[...] + c_ref[...], 0.0)
            slab = jnp.where(interior, act, 0.0).astype(jnp.bfloat16)
        # wp8 is a multiple of 8 -> this reshape is layout-free.
        lhs = slab.reshape(mrows, cinp)
        for dx in range(kw):
            # Full padded-width matmul for this tap; output column c needs the
            # input at padded column c+dx, so align with an XLU roll of -dx
            # (== mrows - dx).  The wrapped tail only lands in halo columns.
            p = jnp.dot(lhs, w_ref[dy * kw + dx],
                        preferred_element_type=jnp.float32)
            if dx:
                p = pltpu.roll(p, mrows - dx, 0)
            acc = p if acc is None else acc + p

    valid = acc.reshape(th, wp8, coutp)[:, :W, :]           # drop halo columns
    y_ref[...] = valid.astype(y_ref.dtype)

    # BN partials from the f32 accumulator (exact), centered per tile.
    v2 = valid.reshape(th * W, coutp)
    s = jnp.sum(v2, axis=0, keepdims=True)
    mu = s * (1.0 / (th * W))
    d = v2 - mu
    stats_ref[...] = jnp.concatenate(
        [s, jnp.sum(d * d, axis=0, keepdims=True)], axis=0)


# ---------------------------------------------------------------------------
# Final streaming pass: folded BatchNorm (y*a + c) + ReLU, f32 output.
# ---------------------------------------------------------------------------
def bn_relu_kernel(y_ref, a_ref, c_ref, o_ref):
    y = y_ref[...].astype(jnp.float32)
    o_ref[...] = jnp.maximum(y * a_ref[...] + c_ref[...], 0.0).astype(o_ref.dtype)


def _conv_stage(xpad, wmat, gamma, beta, *, H, W, Cout, kh, kw,
                a_in, c_in, apply_act, tile_rows):
    """One fused (prev BN+ReLU) -> conv stage.  Returns raw bf16 conv output
    plus this stage's folded BN affine (a, c) for the consumer."""
    N, hpad, wp8, cinp = xpad.shape
    taps, _, coutp = wmat.shape
    vmem_cap = _vmem_cap_bytes()
    th = (tile_rows if tile_rows is not None
          else _pick_tile_rows(H, W, cinp, coutp, vmem_cap // 4))
    assert H % th == 0, "tile_rows must divide H"
    nh = H // th

    if a_in is None:
        a_in = jnp.zeros((1, cinp), jnp.float32)
        c_in = jnp.zeros((1, cinp), jnp.float32)

    est = (2 * hpad * wp8 * cinp * 2        # padded image block (double buf)
           + 2 * taps * cinp * coutp * 2    # weights (double buf)
           + 2 * th * W * coutp * 2         # y out tile (double buf)
           + 2 * th * wp8 * coutp * 4       # f32 accumulator + matmul temp
           + 2 * th * wp8 * cinp * 4        # activation temps
           + (2 << 20))
    vmem_limit = int(min(max(2 * est, 32 << 20), vmem_cap))

    kern = functools.partial(conv_bn_act_stats_kernel, kh=kh, kw=kw,
                             H=H, W=W, apply_act=apply_act)
    # NOTE: the input block is the whole padded image for one batch element;
    # its block index is constant across the row-tile axis, so it is DMA'd
    # once per image (see v7x halo-tiling TODO at the top for huge images).
    y, stats = pl.pallas_call(
        kern,
        out_shape=(
            jax.ShapeDtypeStruct((N, H, W, coutp), jnp.bfloat16),
            jax.ShapeDtypeStruct((N, nh, 2, coutp), jnp.float32),
        ),
        grid=(N, nh),
        in_specs=[
            pl.BlockSpec((None, hpad, wp8, cinp), lambda n, h: (n, 0, 0, 0)),
            pl.BlockSpec((taps, cinp, coutp), lambda n, h: (0, 0, 0)),
            pl.BlockSpec((1, cinp), lambda n, h: (0, 0)),
            pl.BlockSpec((1, cinp), lambda n, h: (0, 0)),
        ],
        out_specs=(
            pl.BlockSpec((None, th, W, coutp), lambda n, h: (n, h, 0, 0)),
            pl.BlockSpec((None, None, 2, coutp), lambda n, h: (n, h, 0, 0)),
        ),
        compiler_params=pltpu.CompilerParams(
            dimension_semantics=("parallel", "parallel"),
            vmem_limit_bytes=vmem_limit),
    )(xpad, wmat, a_in, c_in)

    # Chan-style merge of per-tile (sum, centered M2) -> global batch stats
    # (training-mode BatchNorm, biased variance).  O(Cout) math -> plain JAX.
    m = N * H * W
    n_tile = th * W
    sums = stats[:, :, 0, :]
    m2s = stats[:, :, 1, :]
    mean = jnp.sum(sums, axis=(0, 1)) / m
    tile_mean = sums / n_tile
    var = (jnp.sum(m2s, axis=(0, 1))
           + n_tile * jnp.sum((tile_mean - mean) ** 2, axis=(0, 1))) / m
    var = jnp.maximum(var, 0.0)

    gpad = jnp.pad(gamma.astype(jnp.float32), (0, coutp - Cout))
    bpad = jnp.pad(beta.astype(jnp.float32), (0, coutp - Cout))
    a_vec = (gpad * jax.lax.rsqrt(var + BN_EPS)).reshape(1, coutp)
    c_vec = (bpad - mean * a_vec[0]).reshape(1, coutp)
    return y, a_vec, c_vec


def _bn_relu_final(y_nhwc, a_vec, c_vec, *, out_dtype=jnp.float32):
    N, H, W, coutp = y_nhwc.shape
    m = N * H * W
    tm = _pick_flat_rows(m)                       # >=512..2048 lane-dense rows
    y_flat = y_nhwc.reshape(m, coutp)
    est = tm * coutp * (2 * 2 + 2 * 4) + 4 * coutp * 4 + (1 << 20)
    vmem_limit = int(min(max(2 * est, 32 << 20), _vmem_cap_bytes()))
    out = pl.pallas_call(
        bn_relu_kernel,
        out_shape=jax.ShapeDtypeStruct((m, coutp), out_dtype),
        grid=(m // tm,),
        in_specs=[
            pl.BlockSpec((tm, coutp), lambda i: (i, 0)),
            pl.BlockSpec((1, coutp), lambda i: (0, 0)),
            pl.BlockSpec((1, coutp), lambda i: (0, 0)),
        ],
        out_specs=pl.BlockSpec((tm, coutp), lambda i: (i, 0)),
        compiler_params=pltpu.CompilerParams(
            dimension_semantics=("parallel",),
            vmem_limit_bytes=vmem_limit),
    )(y_flat, a_vec, c_vec)
    return out.reshape(N, H, W, coutp)


def double_conv(x_nchw, params, *, tile_rows=None):
    """DoubleConv forward: (Conv2d 3x3 p1 -> BatchNorm2d(train) -> ReLU) x 2.

    params: list of (w_hwio, bias, gamma, beta).  The conv bias is ignored:
    it cancels exactly under training-mode BatchNorm.
    """
    x = jnp.transpose(x_nchw, (0, 2, 3, 1)).astype(jnp.bfloat16)   # -> NHWC
    N, H, W, Cin = x.shape
    wp8 = _round_up(W + 2, 8)          # width padded so reshapes stay lane/sublane aligned
    cinp = _round_up(Cin, LANE)

    # Zero halo + channel pad for stage 1 (halo handled in-kernel afterwards).
    xpad = jnp.pad(x, ((0, 0), (1, 1), (1, wp8 - W - 1), (0, cinp - Cin)))

    a_vec = c_vec = None
    y = None
    Cout = Cin
    n_stages = len(params)
    for idx, (w_hwio, _bias, gamma, beta) in enumerate(params):
        kh, kw, cin_w, Cout = w_hwio.shape
        assert kh == kw == 3, "kernel expects 3x3 'same' conv"
        coutp = _round_up(Cout, LANE)
        cin_in = xpad.shape[-1]
        wmat = jnp.pad(
            w_hwio.astype(jnp.bfloat16),
            ((0, 0), (0, 0), (0, cin_in - cin_w), (0, coutp - Cout))
        ).reshape(kh * kw, cin_in, coutp)

        y, a_vec, c_vec = _conv_stage(
            xpad, wmat, gamma, beta, H=H, W=W, Cout=Cout, kh=kh, kw=kw,
            a_in=a_vec, c_in=c_vec, apply_act=(idx > 0), tile_rows=tile_rows)

        if idx + 1 < n_stages:
            # Raw bf16 conv output, spatially re-padded for the next stage;
            # its BN+ReLU is applied inside the next stage's kernel.
            xpad = jnp.pad(y, ((0, 0), (1, 1), (1, wp8 - W - 1), (0, 0)))

    out = _bn_relu_final(y, a_vec, c_vec, out_dtype=jnp.float32)
    out = out[..., :Cout]                                    # single slice at the end
    return jnp.transpose(out, (0, 3, 1, 2))                  # NHWC -> NCHW


# ---------------------------------------------------------------------------
# pure-JAX f32 reference for correctness checking (includes the conv bias)
# ---------------------------------------------------------------------------
def _ref_stage(x_nhwc, w_hwio, b, gamma, beta):
    y = jax.lax.conv_general_dilated(
        x_nhwc, w_hwio, window_strides=(1, 1), padding="SAME",
        dimension_numbers=("NHWC", "HWIO", "NHWC"))
    y = y + b
    mean = jnp.mean(y, axis=(0, 1, 2), keepdims=True)
    var = jnp.mean((y - mean) ** 2, axis=(0, 1, 2), keepdims=True)
    y = (y - mean) * jax.lax.rsqrt(var + BN_EPS) * gamma + beta
    return jnp.maximum(y, 0.0)


def _ref_double_conv(x_nchw, params):
    x = jnp.transpose(x_nchw, (0, 2, 3, 1))
    for (w, b, g, bt) in params:
        x = _ref_stage(x, w, b, g, bt)
    return jnp.transpose(x, (0, 3, 1, 2))


if __name__ == "__main__":
    # DoubleConv(in_channels=4, out_channels=8), input (2, 4, 16, 16) NCHW.
    N, Cin, Cout, H, W = 2, 4, 8, 16, 16
    key = jax.random.PRNGKey(0)
    ks = jax.random.split(key, 9)

    # Conv weights in HWIO layout (== PyTorch OIHW transposed to (kh,kw,Cin,Cout)).
    w1 = 0.1 * jax.random.normal(ks[0], (3, 3, Cin, Cout), jnp.float32)
    b1 = 0.1 * jax.random.normal(ks[1], (Cout,), jnp.float32)
    g1 = 1.0 + 0.1 * jax.random.normal(ks[2], (Cout,), jnp.float32)
    bt1 = 0.1 * jax.random.normal(ks[3], (Cout,), jnp.float32)

    w2 = 0.1 * jax.random.normal(ks[4], (3, 3, Cout, Cout), jnp.float32)
    b2 = 0.1 * jax.random.normal(ks[5], (Cout,), jnp.float32)
    g2 = 1.0 + 0.1 * jax.random.normal(ks[6], (Cout,), jnp.float32)
    bt2 = 0.1 * jax.random.normal(ks[7], (Cout,), jnp.float32)

    params = [(w1, b1, g1, bt1), (w2, b2, g2, bt2)]
    x = jax.random.normal(ks[8], (N, Cin, H, W), jnp.float32)

    # tile_rows=8 -> 2 row-tiles per image: exercises the multi-tile grid, the
    # cross-tile BN-stats merge, and the in-kernel halo masks of the fused path.
    out = jax.block_until_ready(double_conv(x, params, tile_rows=8))
    ref = jax.block_until_ready(_ref_double_conv(x, params))

    assert out.shape == (N, Cout, H, W), out.shape
    err = float(jnp.max(jnp.abs(out - ref)))
    # bf16 matmul operands + bf16 inter-stage intermediate vs an f32 reference.
    assert err < 5e-2, err
    print("KERNEL_OK")
</pallas_src>

<mosaic_0001>
module attributes {stable_mosaic.version = 11 : i64} {
  func.func @conv_bn_act_stats_kernel(%arg0: i32, %arg1: i32, %arg2: memref<1x18x24x128xbf16, #tpu.memory_space<vmem>>, %arg3: memref<9x128x128xbf16, #tpu.memory_space<vmem>>, %arg4: memref<1x128xf32, #tpu.memory_space<vmem>>, %arg5: memref<1x128xf32, #tpu.memory_space<vmem>>, %arg6: memref<1x8x16x128xbf16, #tpu.memory_space<vmem>>, %arg7: memref<1x1x2x128xf32, #tpu.memory_space<vmem>>) attributes {dimension_semantics = [#tpu.dimension_semantics<parallel>, #tpu.dimension_semantics<parallel>], iteration_bounds = array<i64: 2, 2>, scalar_prefetch = 0 : i64, scratch_operands = 0 : i64, tpu.core_type = #tpu.core_type<tc>, window_params = [{transform_indices = @transform_0, window_bounds = array<i64: 1, 18, 24, 128>}, {pipeline_mode = #tpu.pipeline_mode<synchronous>, transform_indices = @transform_1, window_bounds = array<i64: 9, 128, 128>}, {pipeline_mode = #tpu.pipeline_mode<synchronous>, transform_indices = @transform_2, window_bounds = array<i64: 1, 128>}, {pipeline_mode = #tpu.pipeline_mode<synchronous>, transform_indices = @transform_3, window_bounds = array<i64: 1, 128>}, {transform_indices = @transform_4, window_bounds = array<i64: 1, 8, 16, 128>}, {transform_indices = @transform_5, window_bounds = array<i64: 1, 1, 2, 128>}]} {
    %c8_i32 = arith.constant 8 : i32
    %0 = arith.muli %arg1, %c8_i32 : i32
    %1 = tpu.assume_multiple %0, 8 : i32
    %c0_i32 = arith.constant 0 : i32
    %2 = arith.addi %1, %c0_i32 : i32
    %c0 = arith.constant 0 : index
    %3 = arith.index_cast %2 : i32 to index
    %c0_0 = arith.constant 0 : index
    %c0_1 = arith.constant 0 : index
    %4 = vector.load %arg2[%c0, %3, %c0_0, %c0_1] : memref<1x18x24x128xbf16, #tpu.memory_space<vmem>>, vector<1x8x24x128xbf16>
    %5 = vector.shape_cast %4 : vector<1x8x24x128xbf16> to vector<8x24x128xbf16>
    %6 = vector.shape_cast %5 : vector<8x24x128xbf16> to vector<192x128xbf16>
    %c0_2 = arith.constant 0 : index
    %c0_3 = arith.constant 0 : index
    %c0_4 = arith.constant 0 : index
    %7 = vector.load %arg3[%c0_2, %c0_3, %c0_4] : memref<9x128x128xbf16, #tpu.memory_space<vmem>>, vector<1x128x128xbf16>
    %8 = vector.shape_cast %7 : vector<1x128x128xbf16> to vector<128x128xbf16>
    %cst = arith.constant dense<0.000000e+00> : vector<192x128xf32>
    %9 = tpu.matmul %6, %8, %cst {dimension_numbers = #tpu.dot_dimension_numbers<[1], [0], [0], [1], [0, 0, 1, 1], [], []>} : vector<192x128xbf16>, vector<128x128xbf16>, vector<192x128xf32> -> vector<192x128xf32>
    %c1 = arith.constant 1 : index
    %c0_5 = arith.constant 0 : index
    %c0_6 = arith.constant 0 : index
    %10 = vector.load %arg3[%c1, %c0_5, %c0_6] : memref<9x128x128xbf16, #tpu.memory_space<vmem>>, vector<1x128x128xbf16>
    %11 = vector.shape_cast %10 : vector<1x128x128xbf16> to vector<128x128xbf16>
    %cst_7 = arith.constant dense<0.000000e+00> : vector<192x128xf32>
    %12 = tpu.matmul %6, %11, %cst_7 {dimension_numbers = #tpu.dot_dimension_numbers<[1], [0], [0], [1], [0, 0, 1, 1], [], []>} : vector<192x128xbf16>, vector<128x128xbf16>, vector<192x128xf32> -> vector<192x128xf32>
    %c191_i32 = arith.constant 191 : i32
    %13 = tpu.dynamic_rotate %12 by %c191_i32 dim 0 : vector<192x128xf32>, i32 -> vector<192x128xf32>
    %14 = arith.addf %9, %13 : vector<192x128xf32>
    %c2 = arith.constant 2 : index
    %c0_8 = arith.constant 0 : index
    %c0_9 = arith.constant 0 : index
    %15 = vector.load %arg3[%c2, %c0_8, %c0_9] : memref<9x128x128xbf16, #tpu.memory_space<vmem>>, vector<1x128x128xbf16>
    %16 = vector.shape_cast %15 : vector<1x128x128xbf16> to vector<128x128xbf16>
    %cst_10 = arith.constant dense<0.000000e+00> : vector<192x128xf32>
    %17 = tpu.matmul %6, %16, %cst_10 {dimension_numbers = #tpu.dot_dimension_numbers<[1], [0], [0], [1], [0, 0, 1, 1], [], []>} : vector<192x128xbf16>, vector<128x128xbf16>, vector<192x128xf32> -> vector<192x128xf32>
    %c190_i32 = arith.constant 190 : i32
    %18 = tpu.dynamic_rotate %17 by %c190_i32 dim 0 : vector<192x128xf32>, i32 -> vector<192x128xf32>
    %19 = arith.addf %14, %18 : vector<192x128xf32>
    %c1_i32 = arith.constant 1 : i32
    %20 = arith.addi %1, %c1_i32 : i32
    %c0_11 = arith.constant 0 : index
    %21 = arith.index_cast %20 : i32 to index
    %c0_12 = arith.constant 0 : index
    %c0_13 = arith.constant 0 : index
    %22 = vector.load %arg2[%c0_11, %21, %c0_12, %c0_13] : memref<1x18x24x128xbf16, #tpu.memory_space<vmem>>, vector<1x8x24x128xbf16>
    %23 = vector.shape_cast %22 : vector<1x8x24x128xbf16> to vector<8x24x128xbf16>
    %24 = vector.shape_cast %23 : vector<8x24x128xbf16> to vector<192x128xbf16>
    %c3 = arith.constant 3 : index
    %c0_14 = arith.constant 0 : index
    %c0_15 = arith.constant 0 : index
    %25 = vector.load %arg3[%c3, %c0_14, %c0_15] : memref<9x128x128xbf16, #tpu.memory_space<vmem>>, vector<1x128x128xbf16>
    %26 = vector.shape_cast %25 : vector<1x128x128xbf16> to vector<128x128xbf16>
    %cst_16 = arith.constant dense<0.000000e+00> : vector<192x128xf32>
    %27 = tpu.matmul %24, %26, %cst_16 {dimension_numbers = #tpu.dot_dimension_numbers<[1], [0], [0], [1], [0, 0, 1, 1], [], []>} : vector<192x128xbf16>, vector<128x128xbf16>, vector<192x128xf32> -> vector<192x128xf32>
    %28 = arith.addf %19, %27 : vector<192x128xf32>
    %c4 = arith.constant 4 : index
    %c0_17 = arith.constant 0 : index
    %c0_18 = arith.constant 0 : index
    %29 = vector.load %arg3[%c4, %c0_17, %c0_18] : memref<9x128x128xbf16, #tpu.memory_space<vmem>>, vector<1x128x128xbf16>
    %30 = vector.shape_cast %29 : vector<1x128x128xbf16> to vector<128x128xbf16>
    %cst_19 = arith.constant dense<0.000000e+00> : vector<192x128xf32>
    %31 = tpu.matmul %24, %30, %cst_19 {dimension_numbers = #tpu.dot_dimension_numbers<[1], [0], [0], [1], [0, 0, 1, 1], [], []>} : vector<192x128xbf16>, vector<128x128xbf16>, vector<192x128xf32> -> vector<192x128xf32>
    %c191_i32_20 = arith.constant 191 : i32
    %32 = tpu.dynamic_rotate %31 by %c191_i32_20 dim 0 : vector<192x128xf32>, i32 -> vector<192x128xf32>
    %33 = arith.addf %28, %32 : vector<192x128xf32>
    %c5 = arith.constant 5 : index
    %c0_21 = arith.constant 0 : index
    %c0_22 = arith.constant 0 : index
    %34 = vector.load %arg3[%c5, %c0_21, %c0_22] : memref<9x128x128xbf16, #tpu.memory_space<vmem>>, vector<1x128x128xbf16>
    %35 = vector.shape_cast %34 : vector<1x128x128xbf16> to vector<128x128xbf16>
    %cst_23 = arith.constant dense<0.000000e+00> : vector<192x128xf32>
    %36 = tpu.matmul %24, %35, %cst_23 {dimension_numbers = #tpu.dot_dimension_numbers<[1], [0], [0], [1], [0, 0, 1, 1], [], []>} : vector<192x128xbf16>, vector<128x128xbf16>, vector<192x128xf32> -> vector<192x128xf32>
    %c190_i32_24 = arith.constant 190 : i32
    %37 = tpu.dynamic_rotate %36 by %c190_i32_24 dim 0 : vector<192x128xf32>, i32 -> vector<192x128xf32>
    %38 = arith.addf %33, %37 : vector<192x128xf32>
    %c2_i32 = arith.constant 2 : i32
    %39 = arith.addi %1, %c2_i32 : i32
    %c0_25 = arith.constant 0 : index
    %40 = arith.index_cast %39 : i32 to index
    %c0_26 = arith.constant 0 : index
    %c0_27 = arith.constant 0 : index
    %41 = vector.load %arg2[%c0_25, %40, %c0_26, %c0_27] : memref<1x18x24x128xbf16, #tpu.memory_space<vmem>>, vector<1x8x24x128xbf16>
    %42 = vector.shape_cast %41 : vector<1x8x24x128xbf16> to vector<8x24x128xbf16>
    %43 = vector.shape_cast %42 : vector<8x24x128xbf16> to vector<192x128xbf16>
    %c6 = arith.constant 6 : index
    %c0_28 = arith.constant 0 : index
    %c0_29 = arith.constant 0 : index
    %44 = vector.load %arg3[%c6, %c0_28, %c0_29] : memref<9x128x128xbf16, #tpu.memory_space<vmem>>, vector<1x128x128xbf16>
    %45 = vector.shape_cast %44 : vector<1x128x128xbf16> to vector<128x128xbf16>
    %cst_30 = arith.constant dense<0.000000e+00> : vector<192x128xf32>
    %46 = tpu.matmul %43, %45, %cst_30 {dimension_numbers = #tpu.dot_dimension_numbers<[1], [0], [0], [1], [0, 0, 1, 1], [], []>} : vector<192x128xbf16>, vector<128x128xbf16>, vector<192x128xf32> -> vector<192x128xf32>
    %47 = arith.addf %38, %46 : vector<192x128xf32>
    %c7 = arith.constant 7 : index
    %c0_31 = arith.constant 0 : index
    %c0_32 = arith.constant 0 : index
    %48 = vector.load %arg3[%c7, %c0_31, %c0_32] : memref<9x128x128xbf16, #tpu.memory_space<vmem>>, vector<1x128x128xbf16>
    %49 = vector.shape_cast %48 : vector<1x128x128xbf16> to vector<128x128xbf16>
    %cst_33 = arith.constant dense<0.000000e+00> : vector<192x128xf32>
    %50 = tpu.matmul %43, %49, %cst_33 {dimension_numbers = #tpu.dot_dimension_numbers<[1], [0], [0], [1], [0, 0, 1, 1], [], []>} : vector<192x128xbf16>, vector<128x128xbf16>, vector<192x128xf32> -> vector<192x128xf32>
    %c191_i32_34 = arith.constant 191 : i32
    %51 = tpu.dynamic_rotate %50 by %c191_i32_34 dim 0 : vector<192x128xf32>, i32 -> vector<192x128xf32>
    %52 = arith.addf %47, %51 : vector<192x128xf32>
    %c8 = arith.constant 8 : index
    %c0_35 = arith.constant 0 : index
    %c0_36 = arith.constant 0 : index
    %53 = vector.load %arg3[%c8, %c0_35, %c0_36] : memref<9x128x128xbf16, #tpu.memory_space<vmem>>, vector<1x128x128xbf16>
    %54 = vector.shape_cast %53 : vector<1x128x128xbf16> to vector<128x128xbf16>
    %cst_37 = arith.constant dense<0.000000e+00> : vector<192x128xf32>
    %55 = tpu.matmul %43, %54, %cst_37 {dimension_numbers = #tpu.dot_dimension_numbers<[1], [0], [0], [1], [0, 0, 1, 1], [], []>} : vector<192x128xbf16>, vector<128x128xbf16>, vector<192x128xf32> -> vector<192x128xf32>
    %c190_i32_38 = arith.constant 190 : i32
    %56 = tpu.dynamic_rotate %55 by %c190_i32_38 dim 0 : vector<192x128xf32>, i32 -> vector<192x128xf32>
    %57 = arith.addf %52, %56 : vector<192x128xf32>
    %58 = vector.shape_cast %57 : vector<192x128xf32> to vector<8x24x128xf32>
    %59 = vector.extract_strided_slice %58 {offsets = [0, 0, 0], sizes = [8, 16, 128], strides = [1, 1, 1]} : vector<8x24x128xf32> to vector<8x16x128xf32>
    %60 = arith.truncf %59 : vector<8x16x128xf32> to vector<8x16x128xbf16>
    %c0_39 = arith.constant 0 : index
    %c0_40 = arith.constant 0 : index
    %c0_41 = arith.constant 0 : index
    %c0_42 = arith.constant 0 : index
    %61 = vector.load %arg6[%c0_39, %c0_40, %c0_41, %c0_42] : memref<1x8x16x128xbf16, #tpu.memory_space<vmem>>, vector<1x8x16x128xbf16>
    %62 = vector.shape_cast %61 : vector<1x8x16x128xbf16> to vector<8x16x128xbf16>
    %63 = vector.shape_cast %60 : vector<8x16x128xbf16> to vector<1x8x16x128xbf16>
    tpu.vector_store %arg6[%c0_39, %c0_40, %c0_41, %c0_42], %63 {strides = array<i32>} : memref<1x8x16x128xbf16, #tpu.memory_space<vmem>>, vector<1x8x16x128xbf16>,
    %64 = vector.shape_cast %59 : vector<8x16x128xf32> to vector<128x128xf32>
    %cst_43 = arith.constant dense<0.000000e+00> : vector<128xf32>
    %65 = vector.multi_reduction <add>, %64, %cst_43 [0] : vector<128x128xf32> to vector<128xf32>
    %66 = vector.shape_cast %65 : vector<128xf32> to vector<1x128xf32>
    %cst_44 = arith.constant 7.812500e-03 : f32
    %67 = vector.broadcast %cst_44 : f32 to vector<1x128xf32>
    %68 = arith.mulf %66, %67 : vector<1x128xf32>
    %69 = vector.broadcast %68 : vector<1x128xf32> to vector<128x128xf32>
    %70 = arith.subf %64, %69 : vector<128x128xf32>
    %71 = arith.mulf %70, %70 : vector<128x128xf32>
    %cst_45 = arith.constant dense<0.000000e+00> : vector<128xf32>
    %72 = vector.multi_reduction <add>, %71, %cst_45 [0] : vector<128x128xf32> to vector<128xf32>
    %73 = vector.shape_cast %72 : vector<128xf32> to vector<1x128xf32>
    %74 = tpu.concatenate %66, %73 in 0 : vector<1x128xf32>, vector<1x128xf32> -> vector<2x128xf32>
    %c0_46 = arith.constant 0 : index
    %c0_47 = arith.constant 0 : index
    %c0_48 = arith.constant 0 : index
    %c0_49 = arith.constant 0 : index
    %75 = vector.load %arg7[%c0_46, %c0_47, %c0_48, %c0_49] : memref<1x1x2x128xf32, #tpu.memory_space<vmem>>, vector<1x1x2x128xf32>
    %76 = vector.shape_cast %75 : vector<1x1x2x128xf32> to vector<2x128xf32>
    %77 = vector.shape_cast %74 : vector<2x128xf32> to vector<1x1x2x128xf32>
    tpu.vector_store %arg7[%c0_46, %c0_47, %c0_48, %c0_49], %77 {strides = array<i32>} : memref<1x1x2x128xf32, #tpu.memory_space<vmem>>, vector<1x1x2x128xf32>,
    return
  }
  func.func @transform_0(%arg0: i32, %arg1: i32) -> (i32, i32, i32, i32) {
    %c0_i32 = arith.constant 0 : i32
    %c0_i32_0 = arith.constant 0 : i32
    %c0_i32_1 = arith.constant 0 : i32
    %c0_i32_2 = arith.constant 0 : i32
    return %arg0, %c0_i32, %c0_i32_0, %c0_i32_1 : i32, i32, i32, i32
  }
  func.func @transform_1(%arg0: i32, %arg1: i32) -> (i32, i32, i32) {
    %c0_i32 = arith.constant 0 : i32
    %c0_i32_0 = arith.constant 0 : i32
    %c0_i32_1 = arith.constant 0 : i32
    %c0_i32_2 = arith.constant 0 : i32
    return %c0_i32, %c0_i32_0, %c0_i32_1 : i32, i32, i32
  }
  func.func @transform_2(%arg0: i32, %arg1: i32) -> (i32, i32) {
    %c0_i32 = arith.constant 0 : i32
    %c0_i32_0 = arith.constant 0 : i32
    %c0_i32_1 = arith.constant 0 : i32
    return %c0_i32, %c0_i32_0 : i32, i32
  }
  func.func @transform_3(%arg0: i32, %arg1: i32) -> (i32, i32) {
    %c0_i32 = arith.constant 0 : i32
    %c0_i32_0 = arith.constant 0 : i32
    %c0_i32_1 = arith.constant 0 : i32
    return %c0_i32, %c0_i32_0 : i32, i32
  }
  func.func @transform_4(%arg0: i32, %arg1: i32) -> (i32, i32, i32, i32) {
    %c0_i32 = arith.constant 0 : i32
    %c0_i32_0 = arith.constant 0 : i32
    %c0_i32_1 = arith.constant 0 : i32
    return %arg0, %arg1, %c0_i32, %c0_i32_0 : i32, i32, i32, i32
  }
  func.func @transform_5(%arg0: i32, %arg1: i32) -> (i32, i32, i32, i32) {
    %c0_i32 = arith.constant 0 : i32
    %c0_i32_0 = arith.constant 0 : i32
    %c0_i32_1 = arith.constant 0 : i32
    return %arg0, %arg1, %c0_i32, %c0_i32_0 : i32, i32, i32, i32
  }
}

</mosaic_0001>

<llo_original>
// kernel: tpu_custom_call.1
$region0: #{tpu_custom_call.1}
  #allocation0 [shape = 'u32[]', space=smem, size = 0x4, offset = 0x4, fixed_abs, tag = 'smem constant byte address 0x4 - core index']
  #allocation1 [shape = 'u32[72,128]{1,0:T(1,128)}', space=vmem, size = 0x9000, scoped, tag = 'internal scratch']
  %s0 = inlined_call_operand.hbm [shape: bf16[2,18,24,128], index: 0, kind: input, shape index: {}]
  %s1 = inlined_call_operand.hbm [shape: bf16[9,128,128], index: 1, kind: input, shape index: {}]
  %s2 = inlined_call_operand.vmem [shape: f32[1,128], index: 2, kind: input, shape index: {}]
  %s3 = inlined_call_operand.vmem [shape: f32[1,128], index: 3, kind: input, shape index: {}]
  %s4 = inlined_call_operand.hbm [shape: bf16[2,16,16,128], index: 4, kind: output, shape index: {0}]
  %s5 = inlined_call_operand.hbm [shape: f32[2,2,2,128], index: 5, kind: output, shape index: {1}]
  %6 = xla_tuple %s4, %s5
  %s7 = sld [smem:[#allocation0]]
  $region65: #{tpu_custom_call.1} parent=0
    _
  %s9 = ssub.s32 1, %s7
  %s10 = scalar_select 0, %s9, %s7
  $region1: #{tpu_custom_call.1} parent=0
    #allocation2 [shape = 'u8[221184]{0}', space=vmem, size = 0x36000, scoped, tag = 'input window, operand 0']
    #allocation3 [shape = 's32[2]{0}', space=sflag, size = 0x8, scoped, tag = 'scoped memory for tpu_custom_call.1']
    #allocation4 [shape = 's32[2]{0}', space=sflag, size = 0x8, scoped, tag = 'scoped memory for tpu_custom_call.1']
    #allocation5 [shape = 'u8[294912]{0}', space=vmem, size = 0x48000, scoped, tag = 'input window, operand 1, single buffered']
    #allocation6 [shape = 's32[1]{0}', space=sflag, size = 0x4, scoped, tag = 'scoped memory for tpu_custom_call.1']
    #allocation7 [shape = 'u8[65536]{0}', space=vmem, size = 0x10000, scoped, tag = 'output window, operand 0']
    #allocation8 [shape = 'u8[2048]{0}', space=vmem, size = 0x800, scoped, tag = 'output window, operand 1']
    #allocation9 [shape = 's32[2]{0}', space=sflag, size = 0x8, scoped, tag = 'scoped memory for tpu_custom_call.1']
    %11 = vsyncpa [#allocation3], 0
    %s12 = scalar_lea.sflag [#allocation3], 1
    %13 = vsyncpa %s12, 0
    %14 = vsyncpa [#allocation6], 0
    %15 = vsyncpa [#allocation4], 0
    %s16 = scalar_lea.sflag [#allocation4], 1
    %17 = vsyncpa %s16, 0
    %18 = vsyncpa [#allocation9], 0
    %s19 = scalar_lea.sflag [#allocation9], 1
    %20 = vsyncpa %s19, 0
    loop: start=0, step=1, limit=6
    $region2: #{tpu_custom_call.1} parent=1 // loop_pre_header
      _
    $region3: #{tpu_custom_call.1} parent=1 // loop_header
      %s22 = sphi 0, %s26
      %p23 = scmp.ge.s32.totalorder %s22, 6
      %s29 = sphi 0, %s41
      %s30 = sphi 0, %s37
      %s31 = sphi 0, %s29
      %s32 = sphi 0, %s30
      %s33 = sphi 0, %s31
      %s34 = sphi 0, %s32
      %s44 = sphi 0, %s46
      %s47 = sphi 0, %s44
      %s48 = sphi 0, %s47
      %s64 = sphi 0, %s48
      %s68 = sphi 0, %s68
      %s70 = sphi 0, %s68
      %s71 = sphi 0, %s70
      %s85 = sphi 0, %s71
      %s89 = sphi 0, %s89
      %s91 = sphi 0, %s89
      %s92 = sphi 0, %s91
      %s106 = sphi 0, %s92
      %s110 = sphi 0, %s110
      %s112 = sphi 0, %s110
      %s113 = sphi 0, %s112
      %s127 = sphi 0, %s113
      %s135 = sphi 0, %s137
      %s138 = sphi 0, %s135
      %s139 = sphi 0, %s138
      %s155 = sphi 0, %s139
      %s163 = sphi 0, %s165
      %s166 = sphi 0, %s163
      %s167 = sphi 0, %s166
      %s183 = sphi 0, %s167
    $region4: #{tpu_custom_call.1} parent=1 // loop_header_branch
      %25 = sbr.rel (%p23) target = $region8
    $region5: #{tpu_custom_call.1} parent=1 // loop_body
      %s27 = ssub.s32 %s22, 1
      %s28 = ssub.s32 %s22, 2
      %s35 = sadd.s32 1, %s30
      %p36 = scmp.ge.s32.totalorder %s35, 2
      %s37 = scalar_select %p36, 0, %s35
      %s38 = sadd.s32 1, %s29
      %s39 = scalar_select %p36, %s38, %s29
      %p40 = scmp.ge.s32.totalorder %s39, 2
      %s41 = scalar_select %p40, 0, %s39
      %s42 = ssub.s32 %s29, %s41
      %p43 = scmp.eq.s32.totalorder %s42, 0
      %s45 = sadd.s32 %s44, 1
      %s46 = scalar_select %p43, %s44, %s45
      %p49 = pneg %p43
      %p50 = scmp.eq.s32.totalorder %s22, 3
      %p51 = por %p49, %p50
      %p52 = scmp.ne.s32.totalorder %s44, %s47
      %p53 = scmp.eq.s32.totalorder %s22, 0
      %p54 = por %p52, %p53
      %p55 = scmp.ne.s32.totalorder %s44, %s47
      %p56 = scmp.eq.s32.totalorder %s27, 3
      %p57 = por %p55, %p56
      %p58 = scmp.ne.s32.totalorder %s47, %s48
      %p59 = scmp.eq.s32.totalorder %s27, 0
      %p60 = por %p58, %p59
      %p61 = scmp.ne.s32.totalorder %s47, %s48
      %p62 = scmp.eq.s32.totalorder %s28, 3
      %p63 = por %p61, %p62
      %p65 = scmp.ne.s32.totalorder %s48, %s64
      %p66 = scmp.eq.s32.totalorder %s28, 0
      %p67 = por %p65, %p66
      %s69 = sadd.s32 %s68, 1
      %p72 = scmp.eq.s32.totalorder %s22, 3
      %p73 = scmp.ne.s32.totalorder %s68, %s70
      %p74 = scmp.eq.s32.totalorder %s22, 0
      %p75 = por %p73, %p74
      %p76 = scmp.ne.s32.totalorder %s68, %s70
      %p77 = scmp.eq.s32.totalorder %s27, 3
      %p78 = por %p76, %p77
      %p79 = scmp.ne.s32.totalorder %s70, %s71
      %p80 = scmp.eq.s32.totalorder %s27, 0
      %p81 = por %p79, %p80
      %p82 = scmp.ne.s32.totalorder %s70, %s71
      %p83 = scmp.eq.s32.totalorder %s28, 3
      %p84 = por %p82, %p83
      %p86 = scmp.ne.s32.totalorder %s71, %s85
      %p87 = scmp.eq.s32.totalorder %s28, 0
      %p88 = por %p86, %p87
      %s90 = sadd.s32 %s89, 1
      %p93 = scmp.eq.s32.totalorder %s22, 3
      %p94 = scmp.ne.s32.totalorder %s89, %s91
      %p95 = scmp.eq.s32.totalorder %s22, 0
      %p96 = por %p94, %p95
      %p97 = scmp.ne.s32.totalorder %s89, %s91
      %p98 = scmp.eq.s32.totalorder %s27, 3
      %p99 = por %p97, %p98
      %p100 = scmp.ne.s32.totalorder %s91, %s92
      %p101 = scmp.eq.s32.totalorder %s27, 0
      %p102 = por %p100, %p101
      %p103 = scmp.ne.s32.totalorder %s91, %s92
      %p104 = scmp.eq.s32.totalorder %s28, 3
      %p105 = por %p103, %p104
      %p107 = scmp.ne.s32.totalorder %s92, %s106
      %p108 = scmp.eq.s32.totalorder %s28, 0
      %p109 = por %p107, %p108
      %s111 = sadd.s32 %s110, 1
      %p114 = scmp.eq.s32.totalorder %s22, 3
      %p115 = scmp.ne.s32.totalorder %s110, %s112
      %p116 = scmp.eq.s32.totalorder %s22, 0
      %p117 = por %p115, %p116
      %p118 = scmp.ne.s32.totalorder %s110, %s112
      %p119 = scmp.eq.s32.totalorder %s27, 3
      %p120 = por %p118, %p119
      %p121 = scmp.ne.s32.totalorder %s112, %s113
      %p122 = scmp.eq.s32.totalorder %s27, 0
      %p123 = por %p121, %p122
      %p124 = scmp.ne.s32.totalorder %s112, %s113
      %p125 = scmp.eq.s32.totalorder %s28, 3
      %p126 = por %p124, %p125
      %p128 = scmp.ne.s32.totalorder %s113, %s127
      %p129 = scmp.eq.s32.totalorder %s28, 0
      %p130 = por %p128, %p129
      %s131 = ssub.s32 %s29, %s41
      %s132 = ssub.s32 %s30, %s37
      %s133 = sor.u32 %s131, %s132
      %p134 = scmp.eq.s32.totalorder %s133, 0
      %s136 = sadd.s32 %s135, 1
      %s137 = scalar_select %p134, %s135, %s136
      %p140 = pneg %p134
      %p141 = scmp.eq.s32.totalorder %s22, 3
      %p142 = por %p140, %p141
      %p143 = scmp.ne.s32.totalorder %s135, %s138
      %p144 = scmp.eq.s32.totalorder %s22, 0
      %p145 = por %p143, %p144
      %p146 = scmp.ne.s32.totalorder %s135, %s138
      %p147 = scmp.eq.s32.totalorder %s27, 3
      %p148 = por %p146, %p147
      %p149 = scmp.ne.s32.totalorder %s138, %s139
      %p150 = scmp.eq.s32.totalorder %s27, 0
      %p151 = por %p149, %p150
      %p152 = scmp.ne.s32.totalorder %s138, %s139
      %p153 = scmp.eq.s32.totalorder %s28, 3
      %p154 = por %p152, %p153
      %p156 = scmp.ne.s32.totalorder %s139, %s155
      %p157 = scmp.eq.s32.totalorder %s28, 0
      %p158 = por %p156, %p157
      %s159 = ssub.s32 %s29, %s41
      %s160 = ssub.s32 %s30, %s37
      %s161 = sor.u32 %s159, %s160
      %p162 = scmp.eq.s32.totalorder %s161, 0
      %s164 = sadd.s32 %s163, 1
      %s165 = scalar_select %p162, %s163, %s164
      %p168 = pneg %p162
      %p169 = scmp.eq.s32.totalorder %s22, 3
      %p170 = por %p168, %p169
      %p171 = scmp.ne.s32.totalorder %s163, %s166
      %p172 = scmp.eq.s32.totalorder %s22, 0
      %p173 = por %p171, %p172
      %p174 = scmp.ne.s32.totalorder %s163, %s166
      %p175 = scmp.eq.s32.totalorder %s27, 3
      %p176 = por %p174, %p175
      %p177 = scmp.ne.s32.totalorder %s166, %s167
      %p178 = scmp.eq.s32.totalorder %s27, 0
      %p179 = por %p177, %p178
      %p180 = scmp.ne.s32.totalorder %s166, %s167
      %p181 = scmp.eq.s32.totalorder %s28, 3
      %p182 = por %p180, %p181
      %p184 = scmp.ne.s32.totalorder %s167, %s183
      %p185 = scmp.eq.s32.totalorder %s28, 0
      %p186 = por %p184, %p185
      %p187 = scmp.le.s32.totalorder 1, %s22
      %p188 = scmp.lt.s32.totalorder %s22, 5
      %p189 = pnand %p187, %p188
      %p190 = pneg %p189
      // Predicated region
      $region9: #{tpu_custom_call.1} parent=5 // pred_check
        _
      $region10: #{tpu_custom_call.1} parent=5 // pred_check_branch
        %192 = sbr.rel (%p189) target = $region12
      $region11: #{tpu_custom_call.1} parent=5 // pred_region
        %s193 = ssub.s32 %s22, 1
        // Predicated region
        $region13: #{tpu_custom_call.1} parent=11 // pred_check
          %p194 = pneg %p81
        $region14: #{tpu_custom_call.1} parent=11 // pred_check_branch
          %196 = sbr.rel (%p194) target = $region16
        $region15: #{tpu_custom_call.1} parent=11 // pred_region
          %198 = vsyncadd [#allocation6], 0
          %s199 = sshll.u32 %s1, 4
          %s200 = int_to_ptr.hbm [resolvable:$true] %s199
          %s201 = sshll.u32 [#allocation5], 4
          %s202 = int_to_ptr.vmem [resolvable:$true] %s201
          %207 = dma.hbm_to_vmem [thread:$0]  %s200, 9216, %s202, [#allocation6], 64, 64, 4
        $region16: #{tpu_custom_call.1} parent=11 // pred_fallthru
          _
        // Predicated region
        $region17: #{tpu_custom_call.1} parent=11 // pred_check
          %p208 = pneg %p102
        $region18: #{tpu_custom_call.1} parent=11 // pred_check_branch
          %210 = sbr.rel (%p208) target = $region20
        $region19: #{tpu_custom_call.1} parent=11 // pred_region
          _
        $region20: #{tpu_custom_call.1} parent=11 // pred_fallthru
          _
        // Predicated region
        $region21: #{tpu_custom_call.1} parent=11 // pred_check
          %p211 = pneg %p123
        $region22: #{tpu_custom_call.1} parent=11 // pred_check_branch
          %213 = sbr.rel (%p211) target = $region24
        $region23: #{tpu_custom_call.1} parent=11 // pred_region
          _
        $region24: #{tpu_custom_call.1} parent=11 // pred_fallthru
          _
      $region12: #{tpu_custom_call.1} parent=5 // pred_fallthru
        _
      %p214 = scmp.lt.s32.totalorder %s22, 4
      // Predicated region
      $region25: #{tpu_custom_call.1} parent=5 // pred_check
        %p215 = pneg %p214
      $region26: #{tpu_custom_call.1} parent=5 // pred_check_branch
        %217 = sbr.rel (%p215) target = $region28
      $region27: #{tpu_custom_call.1} parent=5 // pred_region
        // Predicated region
        $region29: #{tpu_custom_call.1} parent=27 // pred_check
          %p218 = pneg %p54
        $region30: #{tpu_custom_call.1} parent=27 // pred_check_branch
          %220 = sbr.rel (%p218) target = $region32
        $region31: #{tpu_custom_call.1} parent=27 // pred_region
          %s221 = sand.u32 %s44, 1
          %s222 = scalar_lea.sflag [#allocation3], %s221
          %s223 = sand.u32 %s44, 1
          %s224 = smul.addr %s223, 216
          %s225 = scalar_lea.vmem [#allocation2], %s224
          %227 = vsyncadd %s222, 0
          %s228 = smul.addr %s29, 54
          %s229 = smul.addr %s228, 4
          %s230 = scalar_lea.hbm %s0, %s229
          %s231 = sshll.u32 %s230, 4
          %s232 = int_to_ptr.hbm [resolvable:$true] %s231
          %s233 = sshll.u32 %s225, 4
          %s234 = int_to_ptr.vmem [resolvable:$true] %s233
          %239 = dma.hbm_to_vmem [thread:$0]  %s232, 3456, %s234, %s222, 64, 64, 4
        $region32: #{tpu_custom_call.1} parent=27 // pred_fallthru
          _
      $region28: #{tpu_custom_call.1} parent=5 // pred_fallthru
        _
      %p240 = scmp.le.s32.totalorder 1, %s22
      %p241 = scmp.lt.s32.totalorder %s22, 5
      %p242 = pnand %p240, %p241
      %p243 = pneg %p242
      // Predicated region
      $region33: #{tpu_custom_call.1} parent=5 // pred_check
        _
      $region34: #{tpu_custom_call.1} parent=5 // pred_check_branch
        %245 = sbr.rel (%p242) target = $region36
      $region35: #{tpu_custom_call.1} parent=5 // pred_region
        %s246 = ssub.s32 %s22, 1
        %s247 = sand.u32 %s47, 1
        %s248 = scalar_lea.sflag [#allocation3], %s247
        %s249 = sand.u32 %s47, 1
        %s250 = smul.addr %s249, 216
        %s251 = scalar_lea.vmem [#allocation2], %s250
        // Predicated region
        $region37: #{tpu_custom_call.1} parent=35 // pred_check
          %p252 = pneg %p60
        $region38: #{tpu_custom_call.1} parent=35 // pred_check_branch
          %254 = sbr.rel (%p252) target = $region40
        $region39: #{tpu_custom_call.1} parent=35 // pred_region
          %256 = dma.done %s248, 3456
        $region40: #{tpu_custom_call.1} parent=35 // pred_fallthru
          _
        // Predicated region
        $region41: #{tpu_custom_call.1} parent=35 // pred_check
          %p257 = pneg %p81
        $region42: #{tpu_custom_call.1} parent=35 // pred_check_branch
          %259 = sbr.rel (%p257) target = $region44
        $region43: #{tpu_custom_call.1} parent=35 // pred_region
          %261 = dma.done [#allocation6], 9216
        $region44: #{tpu_custom_call.1} parent=35 // pred_fallthru
          _
        %s262 = sand.u32 %s47, 1
        %s263 = scalar_lea.sflag [#allocation3], %s262
        %s264 = sand.u32 %s47, 1
        %s265 = smul.addr %s264, 216
        %s266 = scalar_lea.vmem [#allocation2], %s265
        %p267 = pneg %p60
        %p268 = pneg %p57
        %p269 = pneg %p81
        %p270 = pneg %p78
        %p271 = pneg %p102
        %p272 = pneg %p99
        %p273 = pneg %p123
        %p274 = pneg %p120
        %p275 = pneg %p151
        %p276 = pneg %p148
        %s277 = sand.u32 %s138, 1
        %s278 = scalar_lea.sflag [#allocation4], %s277
        %s279 = sand.u32 %s138, 1
        %s280 = smul.addr %s279, 64
        %s281 = scalar_lea.vmem [#allocation7], %s280
        %p282 = pneg %p179
        %p283 = pneg %p176
        %s284 = sand.u32 %s166, 1
        %s285 = scalar_lea.sflag [#allocation9], %s284
        %s286 = sand.u32 %s166, 1
        %s287 = smul.addr %s286, 2
        %s288 = scalar_lea.vmem [#allocation8], %s287
        %s289 = smul.u32 8, %s32
        %s290 = smul.u32 %s32, 8
        %s291 = smul.u32 %s290, 3
        %s292 = smul.addr %s291, 4
        %s293 = scalar_lea.vmem %s251, %s292 [#allocation2]
        %v294 = vld [vmem:[%s293] sm:$0xf]
        %v295 = vld [vmem:[%s293 + $0x4] sm:$0xf]
        %v296 = vld [vmem:[%s293 + $0x8] sm:$0xf]
        %v297 = vld [vmem:[%s293 + $0xc] sm:$0xf]
        %v298 = vld [vmem:[%s293 + $0x10] sm:$0xf]
        %v299 = vld [vmem:[%s293 + $0x14] sm:$0xf]
        %v300 = vld [vmem:[%s293 + $0x18] sm:$0xf]
        %v301 = vld [vmem:[%s293 + $0x1c] sm:$0xf]
        %v302 = vld [vmem:[%s293 + $0x20] sm:$0xf]
        %v303 = vld [vmem:[%s293 + $0x24] sm:$0xf]
        %v304 = vld [vmem:[%s293 + $0x28] sm:$0xf]
        %v305 = vld [vmem:[%s293 + $0x2c] sm:$0xf]
        %v306 = vld [vmem:[%s293 + $0x30] sm:$0xf]
        %v307 = vld [vmem:[%s293 + $0x34] sm:$0xf]
        %v308 = vld [vmem:[%s293 + $0x38] sm:$0xf]
        %v309 = vld [vmem:[%s293 + $0x3c] sm:$0xf]
        %v310 = vld [vmem:[%s293 + $0x40] sm:$0xf]
        %v311 = vld [vmem:[%s293 + $0x44] sm:$0xf]
        %v312 = vld [vmem:[%s293 + $0x48] sm:$0xf]
        %v313 = vld [vmem:[%s293 + $0x4c] sm:$0xf]
        %v314 = vld [vmem:[%s293 + $0x50] sm:$0xf]
        %v315 = vld [vmem:[%s293 + $0x54] sm:$0xf]
        %v316 = vld [vmem:[%s293 + $0x58] sm:$0xf]
        %v317 = vld [vmem:[%s293 + $0x5c] sm:$0xf]
        %v318 = vld [vmem:[#allocation5] sm:$0xf]
        %v319 = vld [vmem:[#allocation5 + $0x4] sm:$0xf]
        %v320 = vld [vmem:[#allocation5 + $0x8] sm:$0xf]
        %v321 = vld [vmem:[#allocation5 + $0xc] sm:$0xf]
        %v322 = vld [vmem:[#allocation5 + $0x10] sm:$0xf]
        %v323 = vld [vmem:[#allocation5 + $0x14] sm:$0xf]
        %v324 = vld [vmem:[#allocation5 + $0x18] sm:$0xf]
        %v325 = vld [vmem:[#allocation5 + $0x1c] sm:$0xf]
        %v326 = vld [vmem:[#allocation5 + $0x20] sm:$0xf]
        %v327 = vld [vmem:[#allocation5 + $0x24] sm:$0xf]
        %v328 = vld [vmem:[#allocation5 + $0x28] sm:$0xf]
        %v329 = vld [vmem:[#allocation5 + $0x2c] sm:$0xf]
        %v330 = vld [vmem:[#allocation5 + $0x30] sm:$0xf]
        %v331 = vld [vmem:[#allocation5 + $0x34] sm:$0xf]
        %v332 = vld [vmem:[#allocation5 + $0x38] sm:$0xf]
        %v333 = vld [vmem:[#allocation5 + $0x3c] sm:$0xf]
        %s334 = scalar_lea.vmem [#allocation5], 64
        %v335 = vld [vmem:[%s334] sm:$0xf]
        %v336 = vld [vmem:[%s334 + $0x4] sm:$0xf]
        %v337 = vld [vmem:[%s334 + $0x8] sm:$0xf]
        %v338 = vld [vmem:[%s334 + $0xc] sm:$0xf]
        %v339 = vld [vmem:[%s334 + $0x10] sm:$0xf]
        %v340 = vld [vmem:[%s334 + $0x14] sm:$0xf]
        %v341 = vld [vmem:[%s334 + $0x18] sm:$0xf]
        %v342 = vld [vmem:[%s334 + $0x1c] sm:$0xf]
        %v343 = vld [vmem:[%s334 + $0x20] sm:$0xf]
        %v344 = vld [vmem:[%s334 + $0x24] sm:$0xf]
        %v345 = vld [vmem:[%s334 + $0x28] sm:$0xf]
        %v346 = vld [vmem:[%s334 + $0x2c] sm:$0xf]
        %v347 = vld [vmem:[%s334 + $0x30] sm:$0xf]
        %v348 = vld [vmem:[%s334 + $0x34] sm:$0xf]
        %v349 = vld [vmem:[%s334 + $0x38] sm:$0xf]
        %v350 = vld [vmem:[%s334 + $0x3c] sm:$0xf]
        %v375 = vunpack.c.l.b16 %v294
        %v376 = vunpack.c.l.b16 %v295
        %v377 = vunpack.c.l.b16 %v296
        %v378 = vunpack.c.l.b16 %v297
        %v379 = vunpack.c.l.b16 %v298
        %v380 = vunpack.c.l.b16 %v299
        %v381 = vunpack.c.l.b16 %v300
        %v382 = vunpack.c.l.b16 %v301
        %v383 = vunpack.c.l.b16 %v302
        %v384 = vunpack.c.l.b16 %v303
        %v385 = vunpack.c.l.b16 %v304
        %v386 = vunpack.c.l.b16 %v305
        %v387 = vunpack.c.l.b16 %v306
        %v388 = vunpack.c.l.b16 %v307
        %v389 = vunpack.c.l.b16 %v308
        %v390 = vunpack.c.l.b16 %v309
        %v391 = vunpack.c.l.b16 %v310
        %v392 = vunpack.c.l.b16 %v311
        %v393 = vunpack.c.l.b16 %v312
        %v394 = vunpack.c.l.b16 %v313
        %v395 = vunpack.c.l.b16 %v314
        %v396 = vunpack.c.l.b16 %v315
        %v397 = vunpack.c.l.b16 %v316
        %v398 = vunpack.c.l.b16 %v317
        %v399 = vpack.c.b16 %v376, %v375
        %v400 = vpack.c.b16 %v378, %v377
        %v401 = vpack.c.b16 %v380, %v379
        %v402 = vpack.c.b16 %v382, %v381
        %v403 = vpack.c.b16 %v384, %v383
        %v404 = vpack.c.b16 %v386, %v385
        %v405 = vpack.c.b16 %v388, %v387
        %v406 = vpack.c.b16 %v390, %v389
        %v407 = vpack.c.b16 %v392, %v391
        %v408 = vpack.c.b16 %v394, %v393
        %v409 = vpack.c.b16 %v396, %v395
        %v410 = vpack.c.b16 %v398, %v397
        %v439 = vunpack.c.l.b16 %v335
        %v440 = vunpack.c.l.b16 %v336
        %v441 = vunpack.c.l.b16 %v337
        %v442 = vunpack.c.l.b16 %v338
        %v443 = vunpack.c.l.b16 %v339
        %v444 = vunpack.c.l.b16 %v340
        %v445 = vunpack.c.l.b16 %v341
        %v446 = vunpack.c.l.b16 %v342
        %v447 = vunpack.c.l.b16 %v343
        %v448 = vunpack.c.l.b16 %v344
        %v449 = vunpack.c.l.b16 %v345
        %v450 = vunpack.c.l.b16 %v346
        %v451 = vunpack.c.l.b16 %v347
        %v452 = vunpack.c.l.b16 %v348
        %v453 = vunpack.c.l.b16 %v349
        %v454 = vunpack.c.l.b16 %v350
        %v455 = vpack.c.b16 %v440, %v439
        %v456 = vpack.c.b16 %v442, %v441
        %v457 = vpack.c.b16 %v444, %v443
        %v458 = vpack.c.b16 %v446, %v445
        %v459 = vpack.c.b16 %v448, %v447
        %v460 = vpack.c.b16 %v450, %v449
        %v461 = vpack.c.b16 %v452, %v451
        %v462 = vpack.c.b16 %v454, %v453
        %471 = vmatpush.bf16.msra.mxu0 %v462
        %472 = vmatpush.bf16.msra.mxu0 %v461
        %473 = vmatpush.bf16.msra.mxu0 %v460
        %474 = vmatpush.bf16.msra.mxu0 %v459
        %475 = vmatpush.bf16.msra.mxu0 %v458
        %476 = vmatpush.bf16.msra.mxu0 %v457
        %477 = vmatpush.bf16.msra.mxu0 %v456
        %478 = vmatpush.bf16.msra.mxu0 %v455
        %479 = vmatmul.bf16.gmra.mxu0 %v399
        %v480 = vpop.f32.mrf.mxu0
        %v481 = vadd.f32 0.0, %v480
        %v482 = vpop.f32.mrf.mxu0
        %v483 = vadd.f32 0.0, %v482
        %484 = vmatmul.bf16.gmra.mxu0 %v400
        %v485 = vpop.f32.mrf.mxu0
        %v486 = vadd.f32 0.0, %v485
        %v487 = vpop.f32.mrf.mxu0
        %v488 = vadd.f32 0.0, %v487
        %489 = vmatmul.bf16.gmra.mxu0 %v401
        %v490 = vpop.f32.mrf.mxu0
        %v491 = vadd.f32 0.0, %v490
        %v492 = vpop.f32.mrf.mxu0
        %v493 = vadd.f32 0.0, %v492
        %494 = vmatmul.bf16.gmra.mxu0 %v402
        %v495 = vpop.f32.mrf.mxu0
        %v496 = vadd.f32 0.0, %v495
        %v497 = vpop.f32.mrf.mxu0
        %v498 = vadd.f32 0.0, %v497
        %499 = vmatmul.bf16.gmra.mxu0 %v403
        %v500 = vpop.f32.mrf.mxu0
        %v501 = vadd.f32 0.0, %v500
        %v502 = vpop.f32.mrf.mxu0
        %v503 = vadd.f32 0.0, %v502
        %504 = vmatmul.bf16.gmra.mxu0 %v404
        %v505 = vpop.f32.mrf.mxu0
        %v506 = vadd.f32 0.0, %v505
        %v507 = vpop.f32.mrf.mxu0
        %v508 = vadd.f32 0.0, %v507
        %509 = vmatmul.bf16.gmra.mxu0 %v405
        %v510 = vpop.f32.mrf.mxu0
        %v511 = vadd.f32 0.0, %v510
        %v512 = vpop.f32.mrf.mxu0
        %v513 = vadd.f32 0.0, %v512
        %514 = vmatmul.bf16.gmra.mxu0 %v406
        %v515 = vpop.f32.mrf.mxu0
        %v516 = vadd.f32 0.0, %v515
        %v517 = vpop.f32.mrf.mxu0
        %v518 = vadd.f32 0.0, %v517
        %519 = vmatmul.bf16.gmra.mxu0 %v407
        %v520 = vpop.f32.mrf.mxu0
        %v521 = vadd.f32 0.0, %v520
        %v522 = vpop.f32.mrf.mxu0
        %v523 = vadd.f32 0.0, %v522
        %524 = vmatmul.bf16.gmra.mxu0 %v408
        %v525 = vpop.f32.mrf.mxu0
        %v526 = vadd.f32 0.0, %v525
        %v527 = vpop.f32.mrf.mxu0
        %v528 = vadd.f32 0.0, %v527
        %529 = vmatmul.bf16.gmra.mxu0 %v409
        %v530 = vpop.f32.mrf.mxu0
        %v531 = vadd.f32 0.0, %v530
        %v532 = vpop.f32.mrf.mxu0
        %v533 = vadd.f32 0.0, %v532
        %534 = vmatmul.bf16.gmra.mxu0 %v410
        %v535 = vpop.f32.mrf.mxu0
        %v536 = vadd.f32 0.0, %v535
        %v537 = vpop.f32.mrf.mxu0
        %v538 = vadd.f32 0.0, %v537
        %539 = vdwg.mxu0
        %v540 = vrot.slane %v481, 1
        %v541 = vrot.slane %v483, 1
        %v542 = vrot.slane %v486, 1
        %v543 = vrot.slane %v488, 1
        %v544 = vrot.slane %v491, 1
        %v545 = vrot.slane %v493, 1
        %v546 = vrot.slane %v496, 1
        %v547 = vrot.slane %v498, 1
        %v548 = vrot.slane %v501, 1
        %v549 = vrot.slane %v503, 1
        %v550 = vrot.slane %v506, 1
        %v551 = vrot.slane %v508, 1
        %v552 = vrot.slane %v511, 1
        %v553 = vrot.slane %v513, 1
        %v554 = vrot.slane %v516, 1
        %v555 = vrot.slane %v518, 1
        %v556 = vrot.slane %v521, 1
        %v557 = vrot.slane %v523, 1
        %v558 = vrot.slane %v526, 1
        %v559 = vrot.slane %v528, 1
        %v560 = vrot.slane %v531, 1
        %v561 = vrot.slane %v533, 1
        %v562 = vrot.slane %v536, 1
        %v563 = vrot.slane %v538, 1
        %v564 = vlaneseq
        %v565 = vshrl.u32 %v564, 7
        %vm566 = vcmp.lt.s32.totalorder %v565, 7
        %v567 = vsel %vm566, %v562, %v563
        %v568 = vsel %vm566, %v561, %v562
        %v569 = vsel %vm566, %v559, %v560
        %v570 = vsel %vm566, %v558, %v559
        %v571 = vsel %vm566, %v556, %v557
        %v572 = vsel %vm566, %v555, %v556
        %v573 = vsel %vm566, %v553, %v554
        %v574 = vsel %vm566, %v552, %v553
        %v575 = vsel %vm566, %v550, %v551
        %v576 = vsel %vm566, %v549, %v550
        %v577 = vsel %vm566, %v547, %v548
        %v578 = vsel %vm566, %v546, %v547
        %v579 = vsel %vm566, %v544, %v545
        %v580 = vsel %vm566, %v543, %v544
        %v581 = vsel %vm566, %v541, %v542
        %v582 = vsel %vm566, %v540, %v541
        %v599 = vunpack.c.l.b16 %v318
        %v600 = vunpack.c.l.b16 %v319
        %v601 = vunpack.c.l.b16 %v320
        %v602 = vunpack.c.l.b16 %v321
        %v603 = vunpack.c.l.b16 %v322
        %v604 = vunpack.c.l.b16 %v323
        %v605 = vunpack.c.l.b16 %v324
        %v606 = vunpack.c.l.b16 %v325
        %v607 = vunpack.c.l.b16 %v326
        %v608 = vunpack.c.l.b16 %v327
        %v609 = vunpack.c.l.b16 %v328
        %v610 = vunpack.c.l.b16 %v329
        %v611 = vunpack.c.l.b16 %v330
        %v612 = vunpack.c.l.b16 %v331
        %v613 = vunpack.c.l.b16 %v332
        %v614 = vunpack.c.l.b16 %v333
        %v615 = vpack.c.b16 %v600, %v599
        %v616 = vpack.c.b16 %v602, %v601
        %v617 = vpack.c.b16 %v604, %v603
        %v618 = vpack.c.b16 %v606, %v605
        %v619 = vpack.c.b16 %v608, %v607
        %v620 = vpack.c.b16 %v610, %v609
        %v621 = vpack.c.b16 %v612, %v611
        %v622 = vpack.c.b16 %v614, %v613
        %631 = vmatpush.bf16.msra.mxu0 %v622
        %632 = vmatpush.bf16.msra.mxu0 %v621
        %633 = vmatpush.bf16.msra.mxu0 %v620
        %634 = vmatpush.bf16.msra.mxu0 %v619
        %635 = vmatpush.bf16.msra.mxu0 %v618
        %636 = vmatpush.bf16.msra.mxu0 %v617
        %637 = vmatpush.bf16.msra.mxu0 %v616
        %638 = vmatpush.bf16.msra.mxu0 %v615
        %639 = vmatmul.bf16.gmra.mxu0 %v399
        %v640 = vpop.f32.mrf.mxu0
        %v641 = vadd.f32 %v582, %v640
        %v642 = vpop.f32.mrf.mxu0
        %v643 = vadd.f32 %v581, %v642
        %644 = vmatmul.bf16.gmra.mxu0 %v400
        %v645 = vpop.f32.mrf.mxu0
        %v646 = vpop.f32.mrf.mxu0
        %v647 = vadd.f32 %v580, %v646
        %648 = vmatmul.bf16.gmra.mxu0 %v401
        %v649 = vpop.f32.mrf.mxu0
        %v650 = vadd.f32 %v579, %v649
        %v651 = vpop.f32.mrf.mxu0
        %652 = vmatmul.bf16.gmra.mxu0 %v402
        %v653 = vpop.f32.mrf.mxu0
        %v654 = vadd.f32 %v578, %v653
        %v655 = vpop.f32.mrf.mxu0
        %v656 = vadd.f32 %v577, %v655
        %657 = vmatmul.bf16.gmra.mxu0 %v403
        %v658 = vpop.f32.mrf.mxu0
        %v659 = vpop.f32.mrf.mxu0
        %v660 = vadd.f32 %v576, %v659
        %661 = vmatmul.bf16.gmra.mxu0 %v404
        %v662 = vpop.f32.mrf.mxu0
        %v663 = vadd.f32 %v575, %v662
        %v664 = vpop.f32.mrf.mxu0
        %665 = vmatmul.bf16.gmra.mxu0 %v405
        %v666 = vpop.f32.mrf.mxu0
        %v667 = vadd.f32 %v574, %v666
        %v668 = vpop.f32.mrf.mxu0
        %v669 = vadd.f32 %v573, %v668
        %670 = vmatmul.bf16.gmra.mxu0 %v406
        %v671 = vpop.f32.mrf.mxu0
        %v672 = vpop.f32.mrf.mxu0
        %v673 = vadd.f32 %v572, %v672
        %674 = vmatmul.bf16.gmra.mxu0 %v407
        %v675 = vpop.f32.mrf.mxu0
        %v676 = vadd.f32 %v571, %v675
        %v677 = vpop.f32.mrf.mxu0
        %678 = vmatmul.bf16.gmra.mxu0 %v408
        %v679 = vpop.f32.mrf.mxu0
        %v680 = vadd.f32 %v570, %v679
        %v681 = vpop.f32.mrf.mxu0
        %v682 = vadd.f32 %v569, %v681
        %683 = vmatmul.bf16.gmra.mxu0 %v409
        %v684 = vpop.f32.mrf.mxu0
        %v685 = vpop.f32.mrf.mxu0
        %v686 = vadd.f32 %v568, %v685
        %687 = vmatmul.bf16.gmra.mxu0 %v410
        %v688 = vpop.f32.mrf.mxu0
        %v689 = vadd.f32 %v567, %v688
        %v690 = vpop.f32.mrf.mxu0
        %691 = vdwg.mxu0
        %s692 = scalar_lea.vmem [#allocation5], 128
        %v693 = vld [vmem:[%s692] sm:$0xf]
        %v694 = vld [vmem:[%s692 + $0x4] sm:$0xf]
        %v695 = vld [vmem:[%s692 + $0x8] sm:$0xf]
        %v696 = vld [vmem:[%s692 + $0xc] sm:$0xf]
        %v697 = vld [vmem:[%s692 + $0x10] sm:$0xf]
        %v698 = vld [vmem:[%s692 + $0x14] sm:$0xf]
        %v699 = vld [vmem:[%s692 + $0x18] sm:$0xf]
        %v700 = vld [vmem:[%s692 + $0x1c] sm:$0xf]
        %v701 = vld [vmem:[%s692 + $0x20] sm:$0xf]
        %v702 = vld [vmem:[%s692 + $0x24] sm:$0xf]
        %v703 = vld [vmem:[%s692 + $0x28] sm:$0xf]
        %v704 = vld [vmem:[%s692 + $0x2c] sm:$0xf]
        %v705 = vld [vmem:[%s692 + $0x30] sm:$0xf]
        %v706 = vld [vmem:[%s692 + $0x34] sm:$0xf]
        %v707 = vld [vmem:[%s692 + $0x38] sm:$0xf]
        %v708 = vld [vmem:[%s692 + $0x3c] sm:$0xf]
        %v725 = vunpack.c.l.b16 %v693
        %v726 = vunpack.c.l.b16 %v694
        %v727 = vunpack.c.l.b16 %v695
        %v728 = vunpack.c.l.b16 %v696
        %v729 = vunpack.c.l.b16 %v697
        %v730 = vunpack.c.l.b16 %v698
        %v731 = vunpack.c.l.b16 %v699
        %v732 = vunpack.c.l.b16 %v700
        %v733 = vunpack.c.l.b16 %v701
        %v734 = vunpack.c.l.b16 %v702
        %v735 = vunpack.c.l.b16 %v703
        %v736 = vunpack.c.l.b16 %v704
        %v737 = vunpack.c.l.b16 %v705
        %v738 = vunpack.c.l.b16 %v706
        %v739 = vunpack.c.l.b16 %v707
        %v740 = vunpack.c.l.b16 %v708
        %v741 = vpack.c.b16 %v726, %v725
        %v742 = vpack.c.b16 %v728, %v727
        %v743 = vpack.c.b16 %v730, %v729
        %v744 = vpack.c.b16 %v732, %v731
        %v745 = vpack.c.b16 %v734, %v733
        %v746 = vpack.c.b16 %v736, %v735
        %v747 = vpack.c.b16 %v738, %v737
        %v748 = vpack.c.b16 %v740, %v739
        %757 = vmatpush.bf16.msra.mxu0 %v748
        %758 = vmatpush.bf16.msra.mxu0 %v747
        %759 = vmatpush.bf16.msra.mxu0 %v746
        %760 = vmatpush.bf16.msra.mxu0 %v745
        %761 = vmatpush.bf16.msra.mxu0 %v744
        %762 = vmatpush.bf16.msra.mxu0 %v743
        %763 = vmatpush.bf16.msra.mxu0 %v742
        %764 = vmatpush.bf16.msra.mxu0 %v741
        %765 = vmatmul.bf16.gmra.mxu0 %v399
        %v766 = vpop.f32.mrf.mxu0
        %v767 = vadd.f32 0.0, %v766
        %v768 = vpop.f32.mrf.mxu0
        %v769 = vadd.f32 0.0, %v768
        %770 = vmatmul.bf16.gmra.mxu0 %v400
        %v771 = vpop.f32.mrf.mxu0
        %v772 = vadd.f32 0.0, %v771
        %v773 = vpop.f32.mrf.mxu0
        %v774 = vadd.f32 0.0, %v773
        %775 = vmatmul.bf16.gmra.mxu0 %v401
        %v776 = vpop.f32.mrf.mxu0
        %v777 = vadd.f32 0.0, %v776
        %v778 = vpop.f32.mrf.mxu0
        %v779 = vadd.f32 0.0, %v778
        %780 = vmatmul.bf16.gmra.mxu0 %v402
        %v781 = vpop.f32.mrf.mxu0
        %v782 = vadd.f32 0.0, %v781
        %v783 = vpop.f32.mrf.mxu0
        %v784 = vadd.f32 0.0, %v783
        %785 = vmatmul.bf16.gmra.mxu0 %v403
        %v786 = vpop.f32.mrf.mxu0
        %v787 = vadd.f32 0.0, %v786
        %v788 = vpop.f32.mrf.mxu0
        %v789 = vadd.f32 0.0, %v788
        %790 = vmatmul.bf16.gmra.mxu0 %v404
        %v791 = vpop.f32.mrf.mxu0
        %v792 = vadd.f32 0.0, %v791
        %v793 = vpop.f32.mrf.mxu0
        %v794 = vadd.f32 0.0, %v793
        %795 = vmatmul.bf16.gmra.mxu0 %v405
        %v796 = vpop.f32.mrf.mxu0
        %v797 = vadd.f32 0.0, %v796
        %v798 = vpop.f32.mrf.mxu0
        %v799 = vadd.f32 0.0, %v798
        %800 = vmatmul.bf16.gmra.mxu0 %v406
        %v801 = vpop.f32.mrf.mxu0
        %v802 = vadd.f32 0.0, %v801
        %v803 = vpop.f32.mrf.mxu0
        %v804 = vadd.f32 0.0, %v803
        %805 = vmatmul.bf16.gmra.mxu0 %v407
        %v806 = vpop.f32.mrf.mxu0
        %v807 = vadd.f32 0.0, %v806
        %v808 = vpop.f32.mrf.mxu0
        %v809 = vadd.f32 0.0, %v808
        %810 = vmatmul.bf16.gmra.mxu0 %v408
        %v811 = vpop.f32.mrf.mxu0
        %v812 = vadd.f32 0.0, %v811
        %v813 = vpop.f32.mrf.mxu0
        %v814 = vadd.f32 0.0, %v813
        %815 = vmatmul.bf16.gmra.mxu0 %v409
        %v816 = vpop.f32.mrf.mxu0
        %v817 = vadd.f32 0.0, %v816
        %v818 = vpop.f32.mrf.mxu0
        %v819 = vadd.f32 0.0, %v818
        %820 = vmatmul.bf16.gmra.mxu0 %v410
        %v821 = vpop.f32.mrf.mxu0
        %v822 = vadd.f32 0.0, %v821
        %v823 = vpop.f32.mrf.mxu0
        %v824 = vadd.f32 0.0, %v823
        %825 = vdwg.mxu0
        %v826 = vrot.slane %v767, 2
        %v827 = vrot.slane %v769, 2
        %v828 = vrot.slane %v772, 2
        %v829 = vrot.slane %v774, 2
        %v830 = vrot.slane %v777, 2
        %v831 = vrot.slane %v779, 2
        %v832 = vrot.slane %v782, 2
        %v833 = vrot.slane %v784, 2
        %v834 = vrot.slane %v787, 2
        %v835 = vrot.slane %v789, 2
        %v836 = vrot.slane %v792, 2
        %v837 = vrot.slane %v794, 2
        %v838 = vrot.slane %v797, 2
        %v839 = vrot.slane %v799, 2
        %v840 = vrot.slane %v802, 2
        %v841 = vrot.slane %v804, 2
        %v842 = vrot.slane %v807, 2
        %v843 = vrot.slane %v809, 2
        %v844 = vrot.slane %v812, 2
        %v845 = vrot.slane %v814, 2
        %v846 = vrot.slane %v817, 2
        %v847 = vrot.slane %v819, 2
        %v848 = vrot.slane %v822, 2
        %v849 = vrot.slane %v824, 2
        %vm850 = vcmp.lt.s32.totalorder %v565, 6
        %v851 = vsel %vm850, %v848, %v849
        %v852 = vsel %vm850, %v847, %v848
        %v853 = vsel %vm850, %v845, %v846
        %v854 = vsel %vm850, %v844, %v845
        %v855 = vsel %vm850, %v842, %v843
        %v856 = vsel %vm850, %v841, %v842
        %v857 = vsel %vm850, %v839, %v840
        %v858 = vsel %vm850, %v838, %v839
        %v859 = vsel %vm850, %v836, %v837
        %v860 = vsel %vm850, %v835, %v836
        %v861 = vsel %vm850, %v833, %v834
        %v862 = vsel %vm850, %v832, %v833
        %v863 = vsel %vm850, %v830, %v831
        %v864 = vsel %vm850, %v829, %v830
        %v865 = vsel %vm850, %v827, %v828
        %v866 = vsel %vm850, %v826, %v827
        %v867 = vadd.f32 %v641, %v866
        %v868 = vadd.f32 %v643, %v865
        %v869 = vadd.f32 %v647, %v864
        %v870 = vadd.f32 %v650, %v863
        %v871 = vadd.f32 %v654, %v862
        %v872 = vadd.f32 %v656, %v861
        %v873 = vadd.f32 %v660, %v860
        %v874 = vadd.f32 %v663, %v859
        %v875 = vadd.f32 %v667, %v858
        %v876 = vadd.f32 %v669, %v857
        %v877 = vadd.f32 %v673, %v856
        %v878 = vadd.f32 %v676, %v855
        %v879 = vadd.f32 %v680, %v854
        %v880 = vadd.f32 %v682, %v853
        %v881 = vadd.f32 %v686, %v852
        %v882 = vadd.f32 %v689, %v851
        %s883 = sadd.s32 %s290, 1
        %s884 = smul.u32 %s883, 3
        %s885 = smul.addr %s884, 4
        %s886 = scalar_lea.vmem %s251, %s885 [#allocation2]
        %v887 = vld [vmem:[%s886] sm:$0xf]
        %v888 = vld [vmem:[%s886 + $0x4] sm:$0xf]
        %v889 = vld [vmem:[%s886 + $0x8] sm:$0xf]
        %v890 = vld [vmem:[%s886 + $0xc] sm:$0xf]
        %v891 = vld [vmem:[%s886 + $0x10] sm:$0xf]
        %v892 = vld [vmem:[%s886 + $0x14] sm:$0xf]
        %v893 = vld [vmem:[%s886 + $0x18] sm:$0xf]
        %v894 = vld [vmem:[%s886 + $0x1c] sm:$0xf]
        %v895 = vld [vmem:[%s886 + $0x20] sm:$0xf]
        %v896 = vld [vmem:[%s886 + $0x24] sm:$0xf]
        %v897 = vld [vmem:[%s886 + $0x28] sm:$0xf]
        %v898 = vld [vmem:[%s886 + $0x2c] sm:$0xf]
        %v899 = vld [vmem:[%s886 + $0x30] sm:$0xf]
        %v900 = vld [vmem:[%s886 + $0x34] sm:$0xf]
        %v901 = vld [vmem:[%s886 + $0x38] sm:$0xf]
        %v902 = vld [vmem:[%s886 + $0x3c] sm:$0xf]
        %v903 = vld [vmem:[%s886 + $0x40] sm:$0xf]
        %v904 = vld [vmem:[%s886 + $0x44] sm:$0xf]
        %v905 = vld [vmem:[%s886 + $0x48] sm:$0xf]
        %v906 = vld [vmem:[%s886 + $0x4c] sm:$0xf]
        %v907 = vld [vmem:[%s886 + $0x50] sm:$0xf]
        %v908 = vld [vmem:[%s886 + $0x54] sm:$0xf]
        %v909 = vld [vmem:[%s886 + $0x58] sm:$0xf]
        %v910 = vld [vmem:[%s886 + $0x5c] sm:$0xf]
        %s911 = scalar_lea.vmem [#allocation5], 192
        %v912 = vld [vmem:[%s911] sm:$0xf]
        %v913 = vld [vmem:[%s911 + $0x4] sm:$0xf]
        %v914 = vld [vmem:[%s911 + $0x8] sm:$0xf]
        %v915 = vld [vmem:[%s911 + $0xc] sm:$0xf]
        %v916 = vld [vmem:[%s911 + $0x10] sm:$0xf]
        %v917 = vld [vmem:[%s911 + $0x14] sm:$0xf]
        %v918 = vld [vmem:[%s911 + $0x18] sm:$0xf]
        %v919 = vld [vmem:[%s911 + $0x1c] sm:$0xf]
        %v920 = vld [vmem:[%s911 + $0x20] sm:$0xf]
        %v921 = vld [vmem:[%s911 + $0x24] sm:$0xf]
        %v922 = vld [vmem:[%s911 + $0x28] sm:$0xf]
        %v923 = vld [vmem:[%s911 + $0x2c] sm:$0xf]
        %v924 = vld [vmem:[%s911 + $0x30] sm:$0xf]
        %v925 = vld [vmem:[%s911 + $0x34] sm:$0xf]
        %v926 = vld [vmem:[%s911 + $0x38] sm:$0xf]
        %v927 = vld [vmem:[%s911 + $0x3c] sm:$0xf]
        %v952 = vunpack.c.l.b16 %v887
        %v953 = vunpack.c.l.b16 %v888
        %v954 = vunpack.c.l.b16 %v889
        %v955 = vunpack.c.l.b16 %v890
        %v956 = vunpack.c.l.b16 %v891
        %v957 = vunpack.c.l.b16 %v892
        %v958 = vunpack.c.l.b16 %v893
        %v959 = vunpack.c.l.b16 %v894
        %v960 = vunpack.c.l.b16 %v895
        %v961 = vunpack.c.l.b16 %v896
        %v962 = vunpack.c.l.b16 %v897
        %v963 = vunpack.c.l.b16 %v898
        %v964 = vunpack.c.l.b16 %v899
        %v965 = vunpack.c.l.b16 %v900
        %v966 = vunpack.c.l.b16 %v901
        %v967 = vunpack.c.l.b16 %v902
        %v968 = vunpack.c.l.b16 %v903
        %v969 = vunpack.c.l.b16 %v904
        %v970 = vunpack.c.l.b16 %v905
        %v971 = vunpack.c.l.b16 %v906
        %v972 = vunpack.c.l.b16 %v907
        %v973 = vunpack.c.l.b16 %v908
        %v974 = vunpack.c.l.b16 %v909
        %v975 = vunpack.c.l.b16 %v910
        %v976 = vpack.c.b16 %v953, %v952
        %v977 = vpack.c.b16 %v955, %v954
        %v978 = vpack.c.b16 %v957, %v956
        %v979 = vpack.c.b16 %v959, %v958
        %v980 = vpack.c.b16 %v961, %v960
        %v981 = vpack.c.b16 %v963, %v962
        %v982 = vpack.c.b16 %v965, %v964
        %v983 = vpack.c.b16 %v967, %v966
        %v984 = vpack.c.b16 %v969, %v968
        %v985 = vpack.c.b16 %v971, %v970
        %v986 = vpack.c.b16 %v973, %v972
        %v987 = vpack.c.b16 %v975, %v974
        %v1016 = vunpack.c.l.b16 %v912
        %v1017 = vunpack.c.l.b16 %v913
        %v1018 = vunpack.c.l.b16 %v914
        %v1019 = vunpack.c.l.b16 %v915
        %v1020 = vunpack.c.l.b16 %v916
        %v1021 = vunpack.c.l.b16 %v917
        %v1022 = vunpack.c.l.b16 %v918
        %v1023 = vunpack.c.l.b16 %v919
        %v1024 = vunpack.c.l.b16 %v920
        %v1025 = vunpack.c.l.b16 %v921
        %v1026 = vunpack.c.l.b16 %v922
        %v1027 = vunpack.c.l.b16 %v923
        %v1028 = vunpack.c.l.b16 %v924
        %v1029 = vunpack.c.l.b16 %v925
        %v1030 = vunpack.c.l.b16 %v926
        %v1031 = vunpack.c.l.b16 %v927
        %v1032 = vpack.c.b16 %v1017, %v1016
        %v1033 = vpack.c.b16 %v1019, %v1018
        %v1034 = vpack.c.b16 %v1021, %v1020
        %v1035 = vpack.c.b16 %v1023, %v1022
        %v1036 = vpack.c.b16 %v1025, %v1024
        %v1037 = vpack.c.b16 %v1027, %v1026
        %v1038 = vpack.c.b16 %v1029, %v1028
        %v1039 = vpack.c.b16 %v1031, %v1030
        %1048 = vmatpush.bf16.msra.mxu0 %v1039
        %1049 = vmatpush.bf16.msra.mxu0 %v1038
        %1050 = vmatpush.bf16.msra.mxu0 %v1037
        %1051 = vmatpush.bf16.msra.mxu0 %v1036
        %1052 = vmatpush.bf16.msra.mxu0 %v1035
        %1053 = vmatpush.bf16.msra.mxu0 %v1034
        %1054 = vmatpush.bf16.msra.mxu0 %v1033
        %1055 = vmatpush.bf16.msra.mxu0 %v1032
        %1056 = vmatmul.bf16.gmra.mxu0 %v976
        %v1057 = vpop.f32.mrf.mxu0
        %v1058 = vadd.f32 0.0, %v1057
        %v1059 = vpop.f32.mrf.mxu0
        %v1060 = vadd.f32 0.0, %v1059
        %1061 = vmatmul.bf16.gmra.mxu0 %v977
        %v1062 = vpop.f32.mrf.mxu0
        %v1063 = vpop.f32.mrf.mxu0
        %v1064 = vadd.f32 0.0, %v1063
        %1065 = vmatmul.bf16.gmra.mxu0 %v978
        %v1066 = vpop.f32.mrf.mxu0
        %v1067 = vadd.f32 0.0, %v1066
        %v1068 = vpop.f32.mrf.mxu0
        %1069 = vmatmul.bf16.gmra.mxu0 %v979
        %v1070 = vpop.f32.mrf.mxu0
        %v1071 = vadd.f32 0.0, %v1070
        %v1072 = vpop.f32.mrf.mxu0
        %v1073 = vadd.f32 0.0, %v1072
        %1074 = vmatmul.bf16.gmra.mxu0 %v980
        %v1075 = vpop.f32.mrf.mxu0
        %v1076 = vpop.f32.mrf.mxu0
        %v1077 = vadd.f32 0.0, %v1076
        %1078 = vmatmul.bf16.gmra.mxu0 %v981
        %v1079 = vpop.f32.mrf.mxu0
        %v1080 = vadd.f32 0.0, %v1079
        %v1081 = vpop.f32.mrf.mxu0
        %1082 = vmatmul.bf16.gmra.mxu0 %v982
        %v1083 = vpop.f32.mrf.mxu0
        %v1084 = vadd.f32 0.0, %v1083
        %v1085 = vpop.f32.mrf.mxu0
        %v1086 = vadd.f32 0.0, %v1085
        %1087 = vmatmul.bf16.gmra.mxu0 %v983
        %v1088 = vpop.f32.mrf.mxu0
        %v1089 = vpop.f32.mrf.mxu0
        %v1090 = vadd.f32 0.0, %v1089
        %1091 = vmatmul.bf16.gmra.mxu0 %v984
        %v1092 = vpop.f32.mrf.mxu0
        %v1093 = vadd.f32 0.0, %v1092
        %v1094 = vpop.f32.mrf.mxu0
        %1095 = vmatmul.bf16.gmra.mxu0 %v985
        %v1096 = vpop.f32.mrf.mxu0
        %v1097 = vadd.f32 0.0, %v1096
        %v1098 = vpop.f32.mrf.mxu0
        %v1099 = vadd.f32 0.0, %v1098
        %1100 = vmatmul.bf16.gmra.mxu0 %v986
        %v1101 = vpop.f32.mrf.mxu0
        %v1102 = vpop.f32.mrf.mxu0
        %v1103 = vadd.f32 0.0, %v1102
        %1104 = vmatmul.bf16.gmra.mxu0 %v987
        %v1105 = vpop.f32.mrf.mxu0
        %v1106 = vadd.f32 0.0, %v1105
        %v1107 = vpop.f32.mrf.mxu0
        %1108 = vdwg.mxu0
        %v1109 = vadd.f32 %v867, %v1058
        %v1110 = vadd.f32 %v868, %v1060
        %v1111 = vadd.f32 %v869, %v1064
        %v1112 = vadd.f32 %v870, %v1067
        %v1113 = vadd.f32 %v871, %v1071
        %v1114 = vadd.f32 %v872, %v1073
        %v1115 = vadd.f32 %v873, %v1077
        %v1116 = vadd.f32 %v874, %v1080
        %v1117 = vadd.f32 %v875, %v1084
        %v1118 = vadd.f32 %v876, %v1086
        %v1119 = vadd.f32 %v877, %v1090
        %v1120 = vadd.f32 %v878, %v1093
        %v1121 = vadd.f32 %v879, %v1097
        %v1122 = vadd.f32 %v880, %v1099
        %v1123 = vadd.f32 %v881, %v1103
        %v1124 = vadd.f32 %v882, %v1106
        %s1125 = scalar_lea.vmem [#allocation5], 256
        %v1126 = vld [vmem:[%s1125] sm:$0xf]
        %v1127 = vld [vmem:[%s1125 + $0x4] sm:$0xf]
        %v1128 = vld [vmem:[%s1125 + $0x8] sm:$0xf]
        %v1129 = vld [vmem:[%s1125 + $0xc] sm:$0xf]
        %v1130 = vld [vmem:[%s1125 + $0x10] sm:$0xf]
        %v1131 = vld [vmem:[%s1125 + $0x14] sm:$0xf]
        %v1132 = vld [vmem:[%s1125 + $0x18] sm:$0xf]
        %v1133 = vld [vmem:[%s1125 + $0x1c] sm:$0xf]
        %v1134 = vld [vmem:[%s1125 + $0x20] sm:$0xf]
        %v1135 = vld [vmem:[%s1125 + $0x24] sm:$0xf]
        %v1136 = vld [vmem:[%s1125 + $0x28] sm:$0xf]
        %v1137 = vld [vmem:[%s1125 + $0x2c] sm:$0xf]
        %v1138 = vld [vmem:[%s1125 + $0x30] sm:$0xf]
        %v1139 = vld [vmem:[%s1125 + $0x34] sm:$0xf]
        %v1140 = vld [vmem:[%s1125 + $0x38] sm:$0xf]
        %v1141 = vld [vmem:[%s1125 + $0x3c] sm:$0xf]
        %v1158 = vunpack.c.l.b16 %v1126
        %v1159 = vunpack.c.l.b16 %v1127
        %v1160 = vunpack.c.l.b16 %v1128
        %v1161 = vunpack.c.l.b16 %v1129
        %v1162 = vunpack.c.l.b16 %v1130
        %v1163 = vunpack.c.l.b16 %v1131
        %v1164 = vunpack.c.l.b16 %v1132
        %v1165 = vunpack.c.l.b16 %v1133
        %v1166 = vunpack.c.l.b16 %v1134
        %v1167 = vunpack.c.l.b16 %v1135
        %v1168 = vunpack.c.l.b16 %v1136
        %v1169 = vunpack.c.l.b16 %v1137
        %v1170 = vunpack.c.l.b16 %v1138
        %v1171 = vunpack.c.l.b16 %v1139
        %v1172 = vunpack.c.l.b16 %v1140
        %v1173 = vunpack.c.l.b16 %v1141
        %v1174 = vpack.c.b16 %v1159, %v1158
        %v1175 = vpack.c.b16 %v1161, %v1160
        %v1176 = vpack.c.b16 %v1163, %v1162
        %v1177 = vpack.c.b16 %v1165, %v1164
        %v1178 = vpack.c.b16 %v1167, %v1166
        %v1179 = vpack.c.b16 %v1169, %v1168
        %v1180 = vpack.c.b16 %v1171, %v1170
        %v1181 = vpack.c.b16 %v1173, %v1172
        %1190 = vmatpush.bf16.msra.mxu0 %v1181
        %1191 = vmatpush.bf16.msra.mxu0 %v1180
        %1192 = vmatpush.bf16.msra.mxu0 %v1179
        %1193 = vmatpush.bf16.msra.mxu0 %v1178
        %1194 = vmatpush.bf16.msra.mxu0 %v1177
        %1195 = vmatpush.bf16.msra.mxu0 %v1176
        %1196 = vmatpush.bf16.msra.mxu0 %v1175
        %1197 = vmatpush.bf16.msra.mxu0 %v1174
        %1198 = vmatmul.bf16.gmra.mxu0 %v976
        %v1199 = vpop.f32.mrf.mxu0
        %v1200 = vadd.f32 0.0, %v1199
        %v1201 = vpop.f32.mrf.mxu0
        %v1202 = vadd.f32 0.0, %v1201
        %1203 = vmatmul.bf16.gmra.mxu0 %v977
        %v1204 = vpop.f32.mrf.mxu0
        %v1205 = vadd.f32 0.0, %v1204
        %v1206 = vpop.f32.mrf.mxu0
        %v1207 = vadd.f32 0.0, %v1206
        %1208 = vmatmul.bf16.gmra.mxu0 %v978
        %v1209 = vpop.f32.mrf.mxu0
        %v1210 = vadd.f32 0.0, %v1209
        %v1211 = vpop.f32.mrf.mxu0
        %v1212 = vadd.f32 0.0, %v1211
        %1213 = vmatmul.bf16.gmra.mxu0 %v979
        %v1214 = vpop.f32.mrf.mxu0
        %v1215 = vadd.f32 0.0, %v1214
        %v1216 = vpop.f32.mrf.mxu0
        %v1217 = vadd.f32 0.0, %v1216
        %1218 = vmatmul.bf16.gmra.mxu0 %v980
        %v1219 = vpop.f32.mrf.mxu0
        %v1220 = vadd.f32 0.0, %v1219
        %v1221 = vpop.f32.mrf.mxu0
        %v1222 = vadd.f32 0.0, %v1221
        %1223 = vmatmul.bf16.gmra.mxu0 %v981
        %v1224 = vpop.f32.mrf.mxu0
        %v1225 = vadd.f32 0.0, %v1224
        %v1226 = vpop.f32.mrf.mxu0
        %v1227 = vadd.f32 0.0, %v1226
        %1228 = vmatmul.bf16.gmra.mxu0 %v982
        %v1229 = vpop.f32.mrf.mxu0
        %v1230 = vadd.f32 0.0, %v1229
        %v1231 = vpop.f32.mrf.mxu0
        %v1232 = vadd.f32 0.0, %v1231
        %1233 = vmatmul.bf16.gmra.mxu0 %v983
        %v1234 = vpop.f32.mrf.mxu0
        %v1235 = vadd.f32 0.0, %v1234
        %v1236 = vpop.f32.mrf.mxu0
        %v1237 = vadd.f32 0.0, %v1236
        %1238 = vmatmul.bf16.gmra.mxu0 %v984
        %v1239 = vpop.f32.mrf.mxu0
        %v1240 = vadd.f32 0.0, %v1239
        %v1241 = vpop.f32.mrf.mxu0
        %v1242 = vadd.f32 0.0, %v1241
        %1243 = vmatmul.bf16.gmra.mxu0 %v985
        %v1244 = vpop.f32.mrf.mxu0
        %v1245 = vadd.f32 0.0, %v1244
        %v1246 = vpop.f32.mrf.mxu0
        %v1247 = vadd.f32 0.0, %v1246
        %1248 = vmatmul.bf16.gmra.mxu0 %v986
        %v1249 = vpop.f32.mrf.mxu0
        %v1250 = vadd.f32 0.0, %v1249
        %v1251 = vpop.f32.mrf.mxu0
        %v1252 = vadd.f32 0.0, %v1251
        %1253 = vmatmul.bf16.gmra.mxu0 %v987
        %v1254 = vpop.f32.mrf.mxu0
        %v1255 = vadd.f32 0.0, %v1254
        %v1256 = vpop.f32.mrf.mxu0
        %v1257 = vadd.f32 0.0, %v1256
        %1258 = vdwg.mxu0
        %v1259 = vrot.slane %v1200, 1
        %v1260 = vrot.slane %v1202, 1
        %v1261 = vrot.slane %v1205, 1
        %v1262 = vrot.slane %v1207, 1
        %v1263 = vrot.slane %v1210, 1
        %v1264 = vrot.slane %v1212, 1
        %v1265 = vrot.slane %v1215, 1
        %v1266 = vrot.slane %v1217, 1
        %v1267 = vrot.slane %v1220, 1
        %v1268 = vrot.slane %v1222, 1
        %v1269 = vrot.slane %v1225, 1
        %v1270 = vrot.slane %v1227, 1
        %v1271 = vrot.slane %v1230, 1
        %v1272 = vrot.slane %v1232, 1
        %v1273 = vrot.slane %v1235, 1
        %v1274 = vrot.slane %v1237, 1
        %v1275 = vrot.slane %v1240, 1
        %v1276 = vrot.slane %v1242, 1
        %v1277 = vrot.slane %v1245, 1
        %v1278 = vrot.slane %v1247, 1
        %v1279 = vrot.slane %v1250, 1
        %v1280 = vrot.slane %v1252, 1
        %v1281 = vrot.slane %v1255, 1
        %v1282 = vrot.slane %v1257, 1
        %v1283 = vsel %vm566, %v1281, %v1282
        %v1284 = vsel %vm566, %v1280, %v1281
        %v1285 = vsel %vm566, %v1278, %v1279
        %v1286 = vsel %vm566, %v1277, %v1278
        %v1287 = vsel %vm566, %v1275, %v1276
        %v1288 = vsel %vm566, %v1274, %v1275
        %v1289 = vsel %vm566, %v1272, %v1273
        %v1290 = vsel %vm566, %v1271, %v1272
        %v1291 = vsel %vm566, %v1269, %v1270
        %v1292 = vsel %vm566, %v1268, %v1269
        %v1293 = vsel %vm566, %v1266, %v1267
        %v1294 = vsel %vm566, %v1265, %v1266
        %v1295 = vsel %vm566, %v1263, %v1264
        %v1296 = vsel %vm566, %v1262, %v1263
        %v1297 = vsel %vm566, %v1260, %v1261
        %v1298 = vsel %vm566, %v1259, %v1260
        %v1299 = vadd.f32 %v1109, %v1298
        %v1300 = vadd.f32 %v1110, %v1297
        %v1301 = vadd.f32 %v1111, %v1296
        %v1302 = vadd.f32 %v1112, %v1295
        %v1303 = vadd.f32 %v1113, %v1294
        %v1304 = vadd.f32 %v1114, %v1293
        %v1305 = vadd.f32 %v1115, %v1292
        %v1306 = vadd.f32 %v1116, %v1291
        %v1307 = vadd.f32 %v1117, %v1290
        %v1308 = vadd.f32 %v1118, %v1289
        %v1309 = vadd.f32 %v1119, %v1288
        %v1310 = vadd.f32 %v1120, %v1287
        %v1311 = vadd.f32 %v1121, %v1286
        %v1312 = vadd.f32 %v1122, %v1285
        %v1313 = vadd.f32 %v1123, %v1284
        %v1314 = vadd.f32 %v1124, %v1283
        %s1315 = scalar_lea.vmem [#allocation5], 320
        %v1316 = vld [vmem:[%s1315] sm:$0xf]
        %v1317 = vld [vmem:[%s1315 + $0x4] sm:$0xf]
        %v1318 = vld [vmem:[%s1315 + $0x8] sm:$0xf]
        %v1319 = vld [vmem:[%s1315 + $0xc] sm:$0xf]
        %v1320 = vld [vmem:[%s1315 + $0x10] sm:$0xf]
        %v1321 = vld [vmem:[%s1315 + $0x14] sm:$0xf]
        %v1322 = vld [vmem:[%s1315 + $0x18] sm:$0xf]
        %v1323 = vld [vmem:[%s1315 + $0x1c] sm:$0xf]
        %v1324 = vld [vmem:[%s1315 + $0x20] sm:$0xf]
        %v1325 = vld [vmem:[%s1315 + $0x24] sm:$0xf]
        %v1326 = vld [vmem:[%s1315 + $0x28] sm:$0xf]
        %v1327 = vld [vmem:[%s1315 + $0x2c] sm:$0xf]
        %v1328 = vld [vmem:[%s1315 + $0x30] sm:$0xf]
        %v1329 = vld [vmem:[%s1315 + $0x34] sm:$0xf]
        %v1330 = vld [vmem:[%s1315 + $0x38] sm:$0xf]
        %v1331 = vld [vmem:[%s1315 + $0x3c] sm:$0xf]
        %v1348 = vunpack.c.l.b16 %v1316
        %v1349 = vunpack.c.l.b16 %v1317
        %v1350 = vunpack.c.l.b16 %v1318
        %v1351 = vunpack.c.l.b16 %v1319
        %v1352 = vunpack.c.l.b16 %v1320
        %v1353 = vunpack.c.l.b16 %v1321
        %v1354 = vunpack.c.l.b16 %v1322
        %v1355 = vunpack.c.l.b16 %v1323
        %v1356 = vunpack.c.l.b16 %v1324
        %v1357 = vunpack.c.l.b16 %v1325
        %v1358 = vunpack.c.l.b16 %v1326
        %v1359 = vunpack.c.l.b16 %v1327
        %v1360 = vunpack.c.l.b16 %v1328
        %v1361 = vunpack.c.l.b16 %v1329
        %v1362 = vunpack.c.l.b16 %v1330
        %v1363 = vunpack.c.l.b16 %v1331
        %v1364 = vpack.c.b16 %v1349, %v1348
        %v1365 = vpack.c.b16 %v1351, %v1350
        %v1366 = vpack.c.b16 %v1353, %v1352
        %v1367 = vpack.c.b16 %v1355, %v1354
        %v1368 = vpack.c.b16 %v1357, %v1356
        %v1369 = vpack.c.b16 %v1359, %v1358
        %v1370 = vpack.c.b16 %v1361, %v1360
        %v1371 = vpack.c.b16 %v1363, %v1362
        %1380 = vmatpush.bf16.msra.mxu0 %v1371
        %1381 = vmatpush.bf16.msra.mxu0 %v1370
        %1382 = vmatpush.bf16.msra.mxu0 %v1369
        %1383 = vmatpush.bf16.msra.mxu0 %v1368
        %1384 = vmatpush.bf16.msra.mxu0 %v1367
        %1385 = vmatpush.bf16.msra.mxu0 %v1366
        %1386 = vmatpush.bf16.msra.mxu0 %v1365
        %1387 = vmatpush.bf16.msra.mxu0 %v1364
        %1388 = vmatmul.bf16.gmra.mxu0 %v976
        %v1389 = vpop.f32.mrf.mxu0
        %v1390 = vadd.f32 0.0, %v1389
        %v1391 = vpop.f32.mrf.mxu0
        %v1392 = vadd.f32 0.0, %v1391
        %1393 = vmatmul.bf16.gmra.mxu0 %v977
        %v1394 = vpop.f32.mrf.mxu0
        %v1395 = vadd.f32 0.0, %v1394
        %v1396 = vpop.f32.mrf.mxu0
        %v1397 = vadd.f32 0.0, %v1396
        %1398 = vmatmul.bf16.gmra.mxu0 %v978
        %v1399 = vpop.f32.mrf.mxu0
        %v1400 = vadd.f32 0.0, %v1399
        %v1401 = vpop.f32.mrf.mxu0
        %v1402 = vadd.f32 0.0, %v1401
        %1403 = vmatmul.bf16.gmra.mxu0 %v979
        %v1404 = vpop.f32.mrf.mxu0
        %v1405 = vadd.f32 0.0, %v1404
        %v1406 = vpop.f32.mrf.mxu0
        %v1407 = vadd.f32 0.0, %v1406
        %1408 = vmatmul.bf16.gmra.mxu0 %v980
        %v1409 = vpop.f32.mrf.mxu0
        %v1410 = vadd.f32 0.0, %v1409
        %v1411 = vpop.f32.mrf.mxu0
        %v1412 = vadd.f32 0.0, %v1411
        %1413 = vmatmul.bf16.gmra.mxu0 %v981
        %v1414 = vpop.f32.mrf.mxu0
        %v1415 = vadd.f32 0.0, %v1414
        %v1416 = vpop.f32.mrf.mxu0
        %v1417 = vadd.f32 0.0, %v1416
        %1418 = vmatmul.bf16.gmra.mxu0 %v982
        %v1419 = vpop.f32.mrf.mxu0
        %v1420 = vadd.f32 0.0, %v1419
        %v1421 = vpop.f32.mrf.mxu0
        %v1422 = vadd.f32 0.0, %v1421
        %1423 = vmatmul.bf16.gmra.mxu0 %v983
        %v1424 = vpop.f32.mrf.mxu0
        %v1425 = vadd.f32 0.0, %v1424
        %v1426 = vpop.f32.mrf.mxu0
        %v1427 = vadd.f32 0.0, %v1426
        %1428 = vmatmul.bf16.gmra.mxu0 %v984
        %v1429 = vpop.f32.mrf.mxu0
        %v1430 = vadd.f32 0.0, %v1429
        %v1431 = vpop.f32.mrf.mxu0
        %v1432 = vadd.f32 0.0, %v1431
        %1433 = vmatmul.bf16.gmra.mxu0 %v985
        %v1434 = vpop.f32.mrf.mxu0
        %v1435 = vadd.f32 0.0, %v1434
        %v1436 = vpop.f32.mrf.mxu0
        %v1437 = vadd.f32 0.0, %v1436
        %1438 = vmatmul.bf16.gmra.mxu0 %v986
        %v1439 = vpop.f32.mrf.mxu0
        %v1440 = vadd.f32 0.0, %v1439
        %v1441 = vpop.f32.mrf.mxu0
        %v1442 = vadd.f32 0.0, %v1441
        %1443 = vmatmul.bf16.gmra.mxu0 %v987
        %v1444 = vpop.f32.mrf.mxu0
        %v1445 = vadd.f32 0.0, %v1444
        %v1446 = vpop.f32.mrf.mxu0
        %v1447 = vadd.f32 0.0, %v1446
        %1448 = vdwg.mxu0
        %v1449 = vrot.slane %v1390, 2
        %v1450 = vrot.slane %v1392, 2
        %v1451 = vrot.slane %v1395, 2
        %v1452 = vrot.slane %v1397, 2
        %v1453 = vrot.slane %v1400, 2
        %v1454 = vrot.slane %v1402, 2
        %v1455 = vrot.slane %v1405, 2
        %v1456 = vrot.slane %v1407, 2
        %v1457 = vrot.slane %v1410, 2
        %v1458 = vrot.slane %v1412, 2
        %v1459 = vrot.slane %v1415, 2
        %v1460 = vrot.slane %v1417, 2
        %v1461 = vrot.slane %v1420, 2
        %v1462 = vrot.slane %v1422, 2
        %v1463 = vrot.slane %v1425, 2
        %v1464 = vrot.slane %v1427, 2
        %v1465 = vrot.slane %v1430, 2
        %v1466 = vrot.slane %v1432, 2
        %v1467 = vrot.slane %v1435, 2
        %v1468 = vrot.slane %v1437, 2
        %v1469 = vrot.slane %v1440, 2
        %v1470 = vrot.slane %v1442, 2
        %v1471 = vrot.slane %v1445, 2
        %v1472 = vrot.slane %v1447, 2
        %v1473 = vsel %vm850, %v1471, %v1472
        %v1474 = vsel %vm850, %v1470, %v1471
        %v1475 = vsel %vm850, %v1468, %v1469
        %v1476 = vsel %vm850, %v1467, %v1468
        %v1477 = vsel %vm850, %v1465, %v1466
        %v1478 = vsel %vm850, %v1464, %v1465
        %v1479 = vsel %vm850, %v1462, %v1463
        %v1480 = vsel %vm850, %v1461, %v1462
        %v1481 = vsel %vm850, %v1459, %v1460
        %v1482 = vsel %vm850, %v1458, %v1459
        %v1483 = vsel %vm850, %v1456, %v1457
        %v1484 = vsel %vm850, %v1455, %v1456
        %v1485 = vsel %vm850, %v1453, %v1454
        %v1486 = vsel %vm850, %v1452, %v1453
        %v1487 = vsel %vm850, %v1450, %v1451
        %v1488 = vsel %vm850, %v1449, %v1450
        %v1489 = vadd.f32 %v1299, %v1488
        %v1490 = vadd.f32 %v1300, %v1487
        %v1491 = vadd.f32 %v1301, %v1486
        %v1492 = vadd.f32 %v1302, %v1485
        %v1493 = vadd.f32 %v1303, %v1484
        %v1494 = vadd.f32 %v1304, %v1483
        %v1495 = vadd.f32 %v1305, %v1482
        %v1496 = vadd.f32 %v1306, %v1481
        %v1497 = vadd.f32 %v1307, %v1480
        %v1498 = vadd.f32 %v1308, %v1479
        %v1499 = vadd.f32 %v1309, %v1478
        %v1500 = vadd.f32 %v1310, %v1477
        %v1501 = vadd.f32 %v1311, %v1476
        %v1502 = vadd.f32 %v1312, %v1475
        %v1503 = vadd.f32 %v1313, %v1474
        %v1504 = vadd.f32 %v1314, %v1473
        %s1505 = sadd.s32 %s290, 2
        %s1506 = smul.u32 %s1505, 3
        %s1507 = smul.addr %s1506, 4
        %s1508 = scalar_lea.vmem %s251, %s1507 [#allocation2]
        %v1509 = vld [vmem:[%s1508] sm:$0xf]
        %v1510 = vld [vmem:[%s1508 + $0x4] sm:$0xf]
        %v1511 = vld [vmem:[%s1508 + $0x8] sm:$0xf]
        %v1512 = vld [vmem:[%s1508 + $0xc] sm:$0xf]
        %v1513 = vld [vmem:[%s1508 + $0x10] sm:$0xf]
        %v1514 = vld [vmem:[%s1508 + $0x14] sm:$0xf]
        %v1515 = vld [vmem:[%s1508 + $0x18] sm:$0xf]
        %v1516 = vld [vmem:[%s1508 + $0x1c] sm:$0xf]
        %v1517 = vld [vmem:[%s1508 + $0x20] sm:$0xf]
        %v1518 = vld [vmem:[%s1508 + $0x24] sm:$0xf]
        %v1519 = vld [vmem:[%s1508 + $0x28] sm:$0xf]
        %v1520 = vld [vmem:[%s1508 + $0x2c] sm:$0xf]
        %v1521 = vld [vmem:[%s1508 + $0x30] sm:$0xf]
        %v1522 = vld [vmem:[%s1508 + $0x34] sm:$0xf]
        %v1523 = vld [vmem:[%s1508 + $0x38] sm:$0xf]
        %v1524 = vld [vmem:[%s1508 + $0x3c] sm:$0xf]
        %v1525 = vld [vmem:[%s1508 + $0x40] sm:$0xf]
        %v1526 = vld [vmem:[%s1508 + $0x44] sm:$0xf]
        %v1527 = vld [vmem:[%s1508 + $0x48] sm:$0xf]
        %v1528 = vld [vmem:[%s1508 + $0x4c] sm:$0xf]
        %v1529 = vld [vmem:[%s1508 + $0x50] sm:$0xf]
        %v1530 = vld [vmem:[%s1508 + $0x54] sm:$0xf]
        %v1531 = vld [vmem:[%s1508 + $0x58] sm:$0xf]
        %v1532 = vld [vmem:[%s1508 + $0x5c] sm:$0xf]
        %s1533 = scalar_lea.vmem [#allocation5], 384
        %v1534 = vld [vmem:[%s1533] sm:$0xf]
        %v1535 = vld [vmem:[%s1533 + $0x4] sm:$0xf]
        %v1536 = vld [vmem:[%s1533 + $0x8] sm:$0xf]
        %v1537 = vld [vmem:[%s1533 + $0xc] sm:$0xf]
        %v1538 = vld [vmem:[%s1533 + $0x10] sm:$0xf]
        %v1539 = vld [vmem:[%s1533 + $0x14] sm:$0xf]
        %v1540 = vld [vmem:[%s1533 + $0x18] sm:$0xf]
        %v1541 = vld [vmem:[%s1533 + $0x1c] sm:$0xf]
        %v1542 = vld [vmem:[%s1533 + $0x20] sm:$0xf]
        %v1543 = vld [vmem:[%s1533 + $0x24] sm:$0xf]
        %v1544 = vld [vmem:[%s1533 + $0x28] sm:$0xf]
        %v1545 = vld [vmem:[%s1533 + $0x2c] sm:$0xf]
        %v1546 = vld [vmem:[%s1533 + $0x30] sm:$0xf]
        %v1547 = vld [vmem:[%s1533 + $0x34] sm:$0xf]
        %v1548 = vld [vmem:[%s1533 + $0x38] sm:$0xf]
        %v1549 = vld [vmem:[%s1533 + $0x3c] sm:$0xf]
        %v1574 = vunpack.c.l.b16 %v1509
        %v1575 = vunpack.c.l.b16 %v1510
        %v1576 = vunpack.c.l.b16 %v1511
        %v1577 = vunpack.c.l.b16 %v1512
        %v1578 = vunpack.c.l.b16 %v1513
        %v1579 = vunpack.c.l.b16 %v1514
        %v1580 = vunpack.c.l.b16 %v1515
        %v1581 = vunpack.c.l.b16 %v1516
        %v1582 = vunpack.c.l.b16 %v1517
        %v1583 = vunpack.c.l.b16 %v1518
        %v1584 = vunpack.c.l.b16 %v1519
        %v1585 = vunpack.c.l.b16 %v1520
        %v1586 = vunpack.c.l.b16 %v1521
        %v1587 = vunpack.c.l.b16 %v1522
        %v1588 = vunpack.c.l.b16 %v1523
        %v1589 = vunpack.c.l.b16 %v1524
        %v1590 = vunpack.c.l.b16 %v1525
        %v1591 = vunpack.c.l.b16 %v1526
        %v1592 = vunpack.c.l.b16 %v1527
        %v1593 = vunpack.c.l.b16 %v1528
        %v1594 = vunpack.c.l.b16 %v1529
        %v1595 = vunpack.c.l.b16 %v1530
        %v1596 = vunpack.c.l.b16 %v1531
        %v1597 = vunpack.c.l.b16 %v1532
        %v1598 = vpack.c.b16 %v1575, %v1574
        %v1599 = vpack.c.b16 %v1577, %v1576
        %v1600 = vpack.c.b16 %v1579, %v1578
        %v1601 = vpack.c.b16 %v1581, %v1580
        %v1602 = vpack.c.b16 %v1583, %v1582
        %v1603 = vpack.c.b16 %v1585, %v1584
        %v1604 = vpack.c.b16 %v1587, %v1586
        %v1605 = vpack.c.b16 %v1589, %v1588
        %v1606 = vpack.c.b16 %v1591, %v1590
        %v1607 = vpack.c.b16 %v1593, %v1592
        %v1608 = vpack.c.b16 %v1595, %v1594
        %v1609 = vpack.c.b16 %v1597, %v1596
        %v1638 = vunpack.c.l.b16 %v1534
        %v1639 = vunpack.c.l.b16 %v1535
        %v1640 = vunpack.c.l.b16 %v1536
        %v1641 = vunpack.c.l.b16 %v1537
        %v1642 = vunpack.c.l.b16 %v1538
        %v1643 = vunpack.c.l.b16 %v1539
        %v1644 = vunpack.c.l.b16 %v1540
        %v1645 = vunpack.c.l.b16 %v1541
        %v1646 = vunpack.c.l.b16 %v1542
        %v1647 = vunpack.c.l.b16 %v1543
        %v1648 = vunpack.c.l.b16 %v1544
        %v1649 = vunpack.c.l.b16 %v1545
        %v1650 = vunpack.c.l.b16 %v1546
        %v1651 = vunpack.c.l.b16 %v1547
        %v1652 = vunpack.c.l.b16 %v1548
        %v1653 = vunpack.c.l.b16 %v1549
        %v1654 = vpack.c.b16 %v1639, %v1638
        %v1655 = vpack.c.b16 %v1641, %v1640
        %v1656 = vpack.c.b16 %v1643, %v1642
        %v1657 = vpack.c.b16 %v1645, %v1644
        %v1658 = vpack.c.b16 %v1647, %v1646
        %v1659 = vpack.c.b16 %v1649, %v1648
        %v1660 = vpack.c.b16 %v1651, %v1650
        %v1661 = vpack.c.b16 %v1653, %v1652
        %1670 = vmatpush.bf16.msra.mxu0 %v1661
        %1671 = vmatpush.bf16.msra.mxu0 %v1660
        %1672 = vmatpush.bf16.msra.mxu0 %v1659
        %1673 = vmatpush.bf16.msra.mxu0 %v1658
        %1674 = vmatpush.bf16.msra.mxu0 %v1657
        %1675 = vmatpush.bf16.msra.mxu0 %v1656
        %1676 = vmatpush.bf16.msra.mxu0 %v1655
        %1677 = vmatpush.bf16.msra.mxu0 %v1654
        %1678 = vmatmul.bf16.gmra.mxu0 %v1598
        %v1679 = vpop.f32.mrf.mxu0
        %v1680 = vadd.f32 0.0, %v1679
        %v1681 = vpop.f32.mrf.mxu0
        %v1682 = vadd.f32 0.0, %v1681
        %1683 = vmatmul.bf16.gmra.mxu0 %v1599
        %v1684 = vpop.f32.mrf.mxu0
        %v1685 = vpop.f32.mrf.mxu0
        %v1686 = vadd.f32 0.0, %v1685
        %1687 = vmatmul.bf16.gmra.mxu0 %v1600
        %v1688 = vpop.f32.mrf.mxu0
        %v1689 = vadd.f32 0.0, %v1688
        %v1690 = vpop.f32.mrf.mxu0
        %1691 = vmatmul.bf16.gmra.mxu0 %v1601
        %v1692 = vpop.f32.mrf.mxu0
        %v1693 = vadd.f32 0.0, %v1692
        %v1694 = vpop.f32.mrf.mxu0
        %v1695 = vadd.f32 0.0, %v1694
        %1696 = vmatmul.bf16.gmra.mxu0 %v1602
        %v1697 = vpop.f32.mrf.mxu0
        %v1698 = vpop.f32.mrf.mxu0
        %v1699 = vadd.f32 0.0, %v1698
        %1700 = vmatmul.bf16.gmra.mxu0 %v1603
        %v1701 = vpop.f32.mrf.mxu0
        %v1702 = vadd.f32 0.0, %v1701
        %v1703 = vpop.f32.mrf.mxu0
        %1704 = vmatmul.bf16.gmra.mxu0 %v1604
        %v1705 = vpop.f32.mrf.mxu0
        %v1706 = vadd.f32 0.0, %v1705
        %v1707 = vpop.f32.mrf.mxu0
        %v1708 = vadd.f32 0.0, %v1707
        %1709 = vmatmul.bf16.gmra.mxu0 %v1605
        %v1710 = vpop.f32.mrf.mxu0
        %v1711 = vpop.f32.mrf.mxu0
        %v1712 = vadd.f32 0.0, %v1711
        %1713 = vmatmul.bf16.gmra.mxu0 %v1606
        %v1714 = vpop.f32.mrf.mxu0
        %v1715 = vadd.f32 0.0, %v1714
        %v1716 = vpop.f32.mrf.mxu0
        %1717 = vmatmul.bf16.gmra.mxu0 %v1607
        %v1718 = vpop.f32.mrf.mxu0
        %v1719 = vadd.f32 0.0, %v1718
        %v1720 = vpop.f32.mrf.mxu0
        %v1721 = vadd.f32 0.0, %v1720
        %1722 = vmatmul.bf16.gmra.mxu0 %v1608
        %v1723 = vpop.f32.mrf.mxu0
        %v1724 = vpop.f32.mrf.mxu0
        %v1725 = vadd.f32 0.0, %v1724
        %1726 = vmatmul.bf16.gmra.mxu0 %v1609
        %v1727 = vpop.f32.mrf.mxu0
        %v1728 = vadd.f32 0.0, %v1727
        %v1729 = vpop.f32.mrf.mxu0
        %1730 = vdwg.mxu0
        %v1731 = vadd.f32 %v1489, %v1680
        %v1732 = vadd.f32 %v1490, %v1682
        %v1733 = vadd.f32 %v1491, %v1686
        %v1734 = vadd.f32 %v1492, %v1689
        %v1735 = vadd.f32 %v1493, %v1693
        %v1736 = vadd.f32 %v1494, %v1695
        %v1737 = vadd.f32 %v1495, %v1699
        %v1738 = vadd.f32 %v1496, %v1702
        %v1739 = vadd.f32 %v1497, %v1706
        %v1740 = vadd.f32 %v1498, %v1708
        %v1741 = vadd.f32 %v1499, %v1712
        %v1742 = vadd.f32 %v1500, %v1715
        %v1743 = vadd.f32 %v1501, %v1719
        %v1744 = vadd.f32 %v1502, %v1721
        %v1745 = vadd.f32 %v1503, %v1725
        %v1746 = vadd.f32 %v1504, %v1728
        %s1747 = scalar_lea.vmem [#allocation5], 448
        %v1748 = vld [vmem:[%s1747] sm:$0xf]
        %v1749 = vld [vmem:[%s1747 + $0x4] sm:$0xf]
        %v1750 = vld [vmem:[%s1747 + $0x8] sm:$0xf]
        %v1751 = vld [vmem:[%s1747 + $0xc] sm:$0xf]
        %v1752 = vld [vmem:[%s1747 + $0x10] sm:$0xf]
        %v1753 = vld [vmem:[%s1747 + $0x14] sm:$0xf]
        %v1754 = vld [vmem:[%s1747 + $0x18] sm:$0xf]
        %v1755 = vld [vmem:[%s1747 + $0x1c] sm:$0xf]
        %v1756 = vld [vmem:[%s1747 + $0x20] sm:$0xf]
        %v1757 = vld [vmem:[%s1747 + $0x24] sm:$0xf]
        %v1758 = vld [vmem:[%s1747 + $0x28] sm:$0xf]
        %v1759 = vld [vmem:[%s1747 + $0x2c] sm:$0xf]
        %v1760 = vld [vmem:[%s1747 + $0x30] sm:$0xf]
        %v1761 = vld [vmem:[%s1747 + $0x34] sm:$0xf]
        %v1762 = vld [vmem:[%s1747 + $0x38] sm:$0xf]
        %v1763 = vld [vmem:[%s1747 + $0x3c] sm:$0xf]
        %v1780 = vunpack.c.l.b16 %v1748
        %v1781 = vunpack.c.l.b16 %v1749
        %v1782 = vunpack.c.l.b16 %v1750
        %v1783 = vunpack.c.l.b16 %v1751
        %v1784 = vunpack.c.l.b16 %v1752
        %v1785 = vunpack.c.l.b16 %v1753
        %v1786 = vunpack.c.l.b16 %v1754
        %v1787 = vunpack.c.l.b16 %v1755
        %v1788 = vunpack.c.l.b16 %v1756
        %v1789 = vunpack.c.l.b16 %v1757
        %v1790 = vunpack.c.l.b16 %v1758
        %v1791 = vunpack.c.l.b16 %v1759
        %v1792 = vunpack.c.l.b16 %v1760
        %v1793 = vunpack.c.l.b16 %v1761
        %v1794 = vunpack.c.l.b16 %v1762
        %v1795 = vunpack.c.l.b16 %v1763
        %v1796 = vpack.c.b16 %v1781, %v1780
        %v1797 = vpack.c.b16 %v1783, %v1782
        %v1798 = vpack.c.b16 %v1785, %v1784
        %v1799 = vpack.c.b16 %v1787, %v1786
        %v1800 = vpack.c.b16 %v1789, %v1788
        %v1801 = vpack.c.b16 %v1791, %v1790
        %v1802 = vpack.c.b16 %v1793, %v1792
        %v1803 = vpack.c.b16 %v1795, %v1794
        %1812 = vmatpush.bf16.msra.mxu0 %v1803
        %1813 = vmatpush.bf16.msra.mxu0 %v1802
        %1814 = vmatpush.bf16.msra.mxu0 %v1801
        %1815 = vmatpush.bf16.msra.mxu0 %v1800
        %1816 = vmatpush.bf16.msra.mxu0 %v1799
        %1817 = vmatpush.bf16.msra.mxu0 %v1798
        %1818 = vmatpush.bf16.msra.mxu0 %v1797
        %1819 = vmatpush.bf16.msra.mxu0 %v1796
        %1820 = vmatmul.bf16.gmra.mxu0 %v1598
        %v1821 = vpop.f32.mrf.mxu0
        %v1822 = vadd.f32 0.0, %v1821
        %v1823 = vpop.f32.mrf.mxu0
        %v1824 = vadd.f32 0.0, %v1823
        %1825 = vmatmul.bf16.gmra.mxu0 %v1599
        %v1826 = vpop.f32.mrf.mxu0
        %v1827 = vadd.f32 0.0, %v1826
        %v1828 = vpop.f32.mrf.mxu0
        %v1829 = vadd.f32 0.0, %v1828
        %1830 = vmatmul.bf16.gmra.mxu0 %v1600
        %v1831 = vpop.f32.mrf.mxu0
        %v1832 = vadd.f32 0.0, %v1831
        %v1833 = vpop.f32.mrf.mxu0
        %v1834 = vadd.f32 0.0, %v1833
        %1835 = vmatmul.bf16.gmra.mxu0 %v1601
        %v1836 = vpop.f32.mrf.mxu0
        %v1837 = vadd.f32 0.0, %v1836
        %v1838 = vpop.f32.mrf.mxu0
        %v1839 = vadd.f32 0.0, %v1838
        %1840 = vmatmul.bf16.gmra.mxu0 %v1602
        %v1841 = vpop.f32.mrf.mxu0
        %v1842 = vadd.f32 0.0, %v1841
        %v1843 = vpop.f32.mrf.mxu0
        %v1844 = vadd.f32 0.0, %v1843
        %1845 = vmatmul.bf16.gmra.mxu0 %v1603
        %v1846 = vpop.f32.mrf.mxu0
        %v1847 = vadd.f32 0.0, %v1846
        %v1848 = vpop.f32.mrf.mxu0
        %v1849 = vadd.f32 0.0, %v1848
        %1850 = vmatmul.bf16.gmra.mxu0 %v1604
        %v1851 = vpop.f32.mrf.mxu0
        %v1852 = vadd.f32 0.0, %v1851
        %v1853 = vpop.f32.mrf.mxu0
        %v1854 = vadd.f32 0.0, %v1853
        %1855 = vmatmul.bf16.gmra.mxu0 %v1605
        %v1856 = vpop.f32.mrf.mxu0
        %v1857 = vadd.f32 0.0, %v1856
        %v1858 = vpop.f32.mrf.mxu0
        %v1859 = vadd.f32 0.0, %v1858
        %1860 = vmatmul.bf16.gmra.mxu0 %v1606
        %v1861 = vpop.f32.mrf.mxu0
        %v1862 = vadd.f32 0.0, %v1861
        %v1863 = vpop.f32.mrf.mxu0
        %v1864 = vadd.f32 0.0, %v1863
        %1865 = vmatmul.bf16.gmra.mxu0 %v1607
        %v1866 = vpop.f32.mrf.mxu0
        %v1867 = vadd.f32 0.0, %v1866
        %v1868 = vpop.f32.mrf.mxu0
        %v1869 = vadd.f32 0.0, %v1868
        %1870 = vmatmul.bf16.gmra.mxu0 %v1608
        %v1871 = vpop.f32.mrf.mxu0
        %v1872 = vadd.f32 0.0, %v1871
        %v1873 = vpop.f32.mrf.mxu0
        %v1874 = vadd.f32 0.0, %v1873
        %1875 = vmatmul.bf16.gmra.mxu0 %v1609
        %v1876 = vpop.f32.mrf.mxu0
        %v1877 = vadd.f32 0.0, %v1876
        %v1878 = vpop.f32.mrf.mxu0
        %v1879 = vadd.f32 0.0, %v1878
        %1880 = vdwg.mxu0
        %v1881 = vrot.slane %v1822, 1
        %v1882 = vrot.slane %v1824, 1
        %v1883 = vrot.slane %v1827, 1
        %v1884 = vrot.slane %v1829, 1
        %v1885 = vrot.slane %v1832, 1
        %v1886 = vrot.slane %v1834, 1
        %v1887 = vrot.slane %v1837, 1
        %v1888 = vrot.slane %v1839, 1
        %v1889 = vrot.slane %v1842, 1
        %v1890 = vrot.slane %v1844, 1
        %v1891 = vrot.slane %v1847, 1
        %v1892 = vrot.slane %v1849, 1
        %v1893 = vrot.slane %v1852, 1
        %v1894 = vrot.slane %v1854, 1
        %v1895 = vrot.slane %v1857, 1
        %v1896 = vrot.slane %v1859, 1
        %v1897 = vrot.slane %v1862, 1
        %v1898 = vrot.slane %v1864, 1
        %v1899 = vrot.slane %v1867, 1
        %v1900 = vrot.slane %v1869, 1
        %v1901 = vrot.slane %v1872, 1
        %v1902 = vrot.slane %v1874, 1
        %v1903 = vrot.slane %v1877, 1
        %v1904 = vrot.slane %v1879, 1
        %v1905 = vsel %vm566, %v1903, %v1904
        %v1906 = vsel %vm566, %v1902, %v1903
        %v1907 = vsel %vm566, %v1900, %v1901
        %v1908 = vsel %vm566, %v1899, %v1900
        %v1909 = vsel %vm566, %v1897, %v1898
        %v1910 = vsel %vm566, %v1896, %v1897
        %v1911 = vsel %vm566, %v1894, %v1895
        %v1912 = vsel %vm566, %v1893, %v1894
        %v1913 = vsel %vm566, %v1891, %v1892
        %v1914 = vsel %vm566, %v1890, %v1891
        %v1915 = vsel %vm566, %v1888, %v1889
        %v1916 = vsel %vm566, %v1887, %v1888
        %v1917 = vsel %vm566, %v1885, %v1886
        %v1918 = vsel %vm566, %v1884, %v1885
        %v1919 = vsel %vm566, %v1882, %v1883
        %v1920 = vsel %vm566, %v1881, %v1882
        %v1921 = vadd.f32 %v1731, %v1920
        %v1922 = vadd.f32 %v1732, %v1919
        %v1923 = vadd.f32 %v1733, %v1918
        %v1924 = vadd.f32 %v1734, %v1917
        %v1925 = vadd.f32 %v1735, %v1916
        %v1926 = vadd.f32 %v1736, %v1915
        %v1927 = vadd.f32 %v1737, %v1914
        %v1928 = vadd.f32 %v1738, %v1913
        %v1929 = vadd.f32 %v1739, %v1912
        %v1930 = vadd.f32 %v1740, %v1911
        %v1931 = vadd.f32 %v1741, %v1910
        %v1932 = vadd.f32 %v1742, %v1909
        %v1933 = vadd.f32 %v1743, %v1908
        %v1934 = vadd.f32 %v1744, %v1907
        %v1935 = vadd.f32 %v1745, %v1906
        %v1936 = vadd.f32 %v1746, %v1905
        %s1937 = scalar_lea.vmem [#allocation5], 512
        %v1938 = vld [vmem:[%s1937] sm:$0xf]
        %v1939 = vld [vmem:[%s1937 + $0x4] sm:$0xf]
        %v1940 = vld [vmem:[%s1937 + $0x8] sm:$0xf]
        %v1941 = vld [vmem:[%s1937 + $0xc] sm:$0xf]
        %v1942 = vld [vmem:[%s1937 + $0x10] sm:$0xf]
        %v1943 = vld [vmem:[%s1937 + $0x14] sm:$0xf]
        %v1944 = vld [vmem:[%s1937 + $0x18] sm:$0xf]
        %v1945 = vld [vmem:[%s1937 + $0x1c] sm:$0xf]
        %v1946 = vld [vmem:[%s1937 + $0x20] sm:$0xf]
        %v1947 = vld [vmem:[%s1937 + $0x24] sm:$0xf]
        %v1948 = vld [vmem:[%s1937 + $0x28] sm:$0xf]
        %v1949 = vld [vmem:[%s1937 + $0x2c] sm:$0xf]
        %v1950 = vld [vmem:[%s1937 + $0x30] sm:$0xf]
        %v1951 = vld [vmem:[%s1937 + $0x34] sm:$0xf]
        %v1952 = vld [vmem:[%s1937 + $0x38] sm:$0xf]
        %v1953 = vld [vmem:[%s1937 + $0x3c] sm:$0xf]
        %v1970 = vunpack.c.l.b16 %v1938
        %v1971 = vunpack.c.l.b16 %v1939
        %v1972 = vunpack.c.l.b16 %v1940
        %v1973 = vunpack.c.l.b16 %v1941
        %v1974 = vunpack.c.l.b16 %v1942
        %v1975 = vunpack.c.l.b16 %v1943
        %v1976 = vunpack.c.l.b16 %v1944
        %v1977 = vunpack.c.l.b16 %v1945
        %v1978 = vunpack.c.l.b16 %v1946
        %v1979 = vunpack.c.l.b16 %v1947
        %v1980 = vunpack.c.l.b16 %v1948
        %v1981 = vunpack.c.l.b16 %v1949
        %v1982 = vunpack.c.l.b16 %v1950
        %v1983 = vunpack.c.l.b16 %v1951
        %v1984 = vunpack.c.l.b16 %v1952
        %v1985 = vunpack.c.l.b16 %v1953
        %v1986 = vpack.c.b16 %v1971, %v1970
        %v1987 = vpack.c.b16 %v1973, %v1972
        %v1988 = vpack.c.b16 %v1975, %v1974
        %v1989 = vpack.c.b16 %v1977, %v1976
        %v1990 = vpack.c.b16 %v1979, %v1978
        %v1991 = vpack.c.b16 %v1981, %v1980
        %v1992 = vpack.c.b16 %v1983, %v1982
        %v1993 = vpack.c.b16 %v1985, %v1984
        %2002 = vmatpush.bf16.msra.mxu0 %v1993
        %2003 = vmatpush.bf16.msra.mxu0 %v1992
        %2004 = vmatpush.bf16.msra.mxu0 %v1991
        %2005 = vmatpush.bf16.msra.mxu0 %v1990
        %2006 = vmatpush.bf16.msra.mxu0 %v1989
        %2007 = vmatpush.bf16.msra.mxu0 %v1988
        %2008 = vmatpush.bf16.msra.mxu0 %v1987
        %2009 = vmatpush.bf16.msra.mxu0 %v1986
        %2010 = vmatmul.bf16.gmra.mxu0 %v1598
        %v2011 = vpop.f32.mrf.mxu0
        %v2012 = vadd.f32 0.0, %v2011
        %v2013 = vpop.f32.mrf.mxu0
        %v2014 = vadd.f32 0.0, %v2013
        %2015 = vmatmul.bf16.gmra.mxu0 %v1599
        %v2016 = vpop.f32.mrf.mxu0
        %v2017 = vadd.f32 0.0, %v2016
        %v2018 = vpop.f32.mrf.mxu0
        %v2019 = vadd.f32 0.0, %v2018
        %2020 = vmatmul.bf16.gmra.mxu0 %v1600
        %v2021 = vpop.f32.mrf.mxu0
        %v2022 = vadd.f32 0.0, %v2021
        %v2023 = vpop.f32.mrf.mxu0
        %v2024 = vadd.f32 0.0, %v2023
        %2025 = vmatmul.bf16.gmra.mxu0 %v1601
        %v2026 = vpop.f32.mrf.mxu0
        %v2027 = vadd.f32 0.0, %v2026
        %v2028 = vpop.f32.mrf.mxu0
        %v2029 = vadd.f32 0.0, %v2028
        %2030 = vmatmul.bf16.gmra.mxu0 %v1602
        %v2031 = vpop.f32.mrf.mxu0
        %v2032 = vadd.f32 0.0, %v2031
        %v2033 = vpop.f32.mrf.mxu0
        %v2034 = vadd.f32 0.0, %v2033
        %2035 = vmatmul.bf16.gmra.mxu0 %v1603
        %v2036 = vpop.f32.mrf.mxu0
        %v2037 = vadd.f32 0.0, %v2036
        %v2038 = vpop.f32.mrf.mxu0
        %v2039 = vadd.f32 0.0, %v2038
        %2040 = vmatmul.bf16.gmra.mxu0 %v1604
        %v2041 = vpop.f32.mrf.mxu0
        %v2042 = vadd.f32 0.0, %v2041
        %v2043 = vpop.f32.mrf.mxu0
        %v2044 = vadd.f32 0.0, %v2043
        %2045 = vmatmul.bf16.gmra.mxu0 %v1605
        %v2046 = vpop.f32.mrf.mxu0
        %v2047 = vadd.f32 0.0, %v2046
        %v2048 = vpop.f32.mrf.mxu0
        %v2049 = vadd.f32 0.0, %v2048
        %2050 = vmatmul.bf16.gmra.mxu0 %v1606
        %v2051 = vpop.f32.mrf.mxu0
        %v2052 = vadd.f32 0.0, %v2051
        %v2053 = vpop.f32.mrf.mxu0
        %v2054 = vadd.f32 0.0, %v2053
        %2055 = vmatmul.bf16.gmra.mxu0 %v1607
        %v2056 = vpop.f32.mrf.mxu0
        %v2057 = vadd.f32 0.0, %v2056
        %v2058 = vpop.f32.mrf.mxu0
        %v2059 = vadd.f32 0.0, %v2058
        %2060 = vmatmul.bf16.gmra.mxu0 %v1608
        %v2061 = vpop.f32.mrf.mxu0
        %v2062 = vadd.f32 0.0, %v2061
        %v2063 = vpop.f32.mrf.mxu0
        %v2064 = vadd.f32 0.0, %v2063
        %2065 = vmatmul.bf16.gmra.mxu0 %v1609
        %v2066 = vpop.f32.mrf.mxu0
        %v2067 = vadd.f32 0.0, %v2066
        %v2068 = vpop.f32.mrf.mxu0
        %v2069 = vadd.f32 0.0, %v2068
        %2070 = vdwg.mxu0
        %v2071 = vrot.slane %v2012, 2
        %v2072 = vrot.slane %v2014, 2
        %v2073 = vrot.slane %v2017, 2
        %v2074 = vrot.slane %v2019, 2
        %v2075 = vrot.slane %v2022, 2
        %v2076 = vrot.slane %v2024, 2
        %v2077 = vrot.slane %v2027, 2
        %v2078 = vrot.slane %v2029, 2
        %v2079 = vrot.slane %v2032, 2
        %v2080 = vrot.slane %v2034, 2
        %v2081 = vrot.slane %v2037, 2
        %v2082 = vrot.slane %v2039, 2
        %v2083 = vrot.slane %v2042, 2
        %v2084 = vrot.slane %v2044, 2
        %v2085 = vrot.slane %v2047, 2
        %v2086 = vrot.slane %v2049, 2
        %v2087 = vrot.slane %v2052, 2
        %v2088 = vrot.slane %v2054, 2
        %v2089 = vrot.slane %v2057, 2
        %v2090 = vrot.slane %v2059, 2
        %v2091 = vrot.slane %v2062, 2
        %v2092 = vrot.slane %v2064, 2
        %v2093 = vrot.slane %v2067, 2
        %v2094 = vrot.slane %v2069, 2
        %v2095 = vsel %vm850, %v2093, %v2094
        %v2096 = vsel %vm850, %v2092, %v2093
        %v2097 = vsel %vm850, %v2090, %v2091
        %v2098 = vsel %vm850, %v2089, %v2090
        %v2099 = vsel %vm850, %v2087, %v2088
        %v2100 = vsel %vm850, %v2086, %v2087
        %v2101 = vsel %vm850, %v2084, %v2085
        %v2102 = vsel %vm850, %v2083, %v2084
        %v2103 = vsel %vm850, %v2081, %v2082
        %v2104 = vsel %vm850, %v2080, %v2081
        %v2105 = vsel %vm850, %v2078, %v2079
        %v2106 = vsel %vm850, %v2077, %v2078
        %v2107 = vsel %vm850, %v2075, %v2076
        %v2108 = vsel %vm850, %v2074, %v2075
        %v2109 = vsel %vm850, %v2072, %v2073
        %v2110 = vsel %vm850, %v2071, %v2072
        %v2111 = vadd.f32 %v1921, %v2110
        %v2112 = vadd.f32 %v1922, %v2109
        %v2113 = vadd.f32 %v1923, %v2108
        %v2114 = vadd.f32 %v1924, %v2107
        %v2115 = vadd.f32 %v1925, %v2106
        %v2116 = vadd.f32 %v1926, %v2105
        %v2117 = vadd.f32 %v1927, %v2104
        %v2118 = vadd.f32 %v1928, %v2103
        %v2119 = vadd.f32 %v1929, %v2102
        %v2120 = vadd.f32 %v1930, %v2101
        %v2121 = vadd.f32 %v1931, %v2100
        %v2122 = vadd.f32 %v1932, %v2099
        %v2123 = vadd.f32 %v1933, %v2098
        %v2124 = vadd.f32 %v1934, %v2097
        %v2125 = vadd.f32 %v1935, %v2096
        %v2126 = vadd.f32 %v1936, %v2095
        %v2127 = vpack.c.bf16 %v2111, %v2111
        %v2128 = vpack.c.bf16 %v2112, %v2112
        %v2129 = vpack.c.bf16 %v2113, %v2113
        %v2130 = vpack.c.bf16 %v2114, %v2114
        %v2131 = vpack.c.bf16 %v2115, %v2115
        %v2132 = vpack.c.bf16 %v2116, %v2116
        %v2133 = vpack.c.bf16 %v2117, %v2117
        %v2134 = vpack.c.bf16 %v2118, %v2118
        %v2135 = vpack.c.bf16 %v2119, %v2119
        %v2136 = vpack.c.bf16 %v2120, %v2120
        %v2137 = vpack.c.bf16 %v2121, %v2121
        %v2138 = vpack.c.bf16 %v2122, %v2122
        %v2139 = vpack.c.bf16 %v2123, %v2123
        %v2140 = vpack.c.bf16 %v2124, %v2124
        %v2141 = vpack.c.bf16 %v2125, %v2125
        %v2142 = vpack.c.bf16 %v2126, %v2126
        %2143 = vst [vmem:[%s281] sm:$0xf] %v2127
        %2144 = vst [vmem:[%s281 + $0x4] sm:$0xf] %v2128
        %2145 = vst [vmem:[%s281 + $0x8] sm:$0xf] %v2129
        %2146 = vst [vmem:[%s281 + $0xc] sm:$0xf] %v2130
        %2147 = vst [vmem:[%s281 + $0x10] sm:$0xf] %v2131
        %2148 = vst [vmem:[%s281 + $0x14] sm:$0xf] %v2132
        %2149 = vst [vmem:[%s281 + $0x18] sm:$0xf] %v2133
        %2150 = vst [vmem:[%s281 + $0x1c] sm:$0xf] %v2134
        %2151 = vst [vmem:[%s281 + $0x20] sm:$0xf] %v2135
        %2152 = vst [vmem:[%s281 + $0x24] sm:$0xf] %v2136
        %2153 = vst [vmem:[%s281 + $0x28] sm:$0xf] %v2137
        %2154 = vst [vmem:[%s281 + $0x2c] sm:$0xf] %v2138
        %2155 = vst [vmem:[%s281 + $0x30] sm:$0xf] %v2139
        %2156 = vst [vmem:[%s281 + $0x34] sm:$0xf] %v2140
        %2157 = vst [vmem:[%s281 + $0x38] sm:$0xf] %v2141
        %2158 = vst [vmem:[%s281 + $0x3c] sm:$0xf] %v2142
        %v2159 = vadd.f32 %v2111, %v2112
        %v2160 = vadd.f32 %v2159, %v2113
        %v2161 = vadd.f32 %v2160, %v2114
        %v2162 = vadd.f32 %v2161, %v2115
        %v2163 = vadd.f32 %v2162, %v2116
        %v2164 = vadd.f32 %v2163, %v2117
        %v2165 = vadd.f32 %v2164, %v2118
        %v2166 = vadd.f32 %v2165, %v2119
        %v2167 = vadd.f32 %v2166, %v2120
        %v2168 = vadd.f32 %v2167, %v2121
        %v2169 = vadd.f32 %v2168, %v2122
        %v2170 = vadd.f32 %v2169, %v2123
        %v2171 = vadd.f32 %v2170, %v2124
        %v2172 = vadd.f32 %v2171, %v2125
        %v2173 = vadd.f32 %v2172, %v2126
        %v2174 = vrot.slane %v2173, 4
        %v2175 = vadd.f32 %v2173, %v2174
        %v2176 = vrot.slane %v2175, 2
        %v2177 = vadd.f32 %v2175, %v2176
        %v2178 = vrot.slane %v2177, 1
        %v2179 = vadd.f32 %v2177, %v2178
        %v2180 = vmul.f32 %v2179, 0.0078125
        %v2181 = vsub.f32 %v2111, %v2180
        %v2182 = vsub.f32 %v2112, %v2180
        %v2183 = vsub.f32 %v2113, %v2180
        %v2184 = vsub.f32 %v2114, %v2180
        %v2185 = vsub.f32 %v2115, %v2180
        %v2186 = vsub.f32 %v2116, %v2180
        %v2187 = vsub.f32 %v2117, %v2180
        %v2188 = vsub.f32 %v2118, %v2180
        %v2189 = vsub.f32 %v2119, %v2180
        %v2190 = vsub.f32 %v2120, %v2180
        %v2191 = vsub.f32 %v2121, %v2180
        %v2192 = vsub.f32 %v2122, %v2180
        %v2193 = vsub.f32 %v2123, %v2180
        %v2194 = vsub.f32 %v2124, %v2180
        %v2195 = vsub.f32 %v2125, %v2180
        %v2196 = vsub.f32 %v2126, %v2180
        %v2197 = vmul.f32 %v2181, %v2181
        %v2198 = vmul.f32 %v2182, %v2182
        %v2199 = vmul.f32 %v2183, %v2183
        %v2200 = vmul.f32 %v2184, %v2184
        %v2201 = vmul.f32 %v2185, %v2185
        %v2202 = vmul.f32 %v2186, %v2186
        %v2203 = vmul.f32 %v2187, %v2187
        %v2204 = vmul.f32 %v2188, %v2188
        %v2205 = vmul.f32 %v2189, %v2189
        %v2206 = vmul.f32 %v2190, %v2190
        %v2207 = vmul.f32 %v2191, %v2191
        %v2208 = vmul.f32 %v2192, %v2192
        %v2209 = vmul.f32 %v2193, %v2193
        %v2210 = vmul.f32 %v2194, %v2194
        %v2211 = vmul.f32 %v2195, %v2195
        %v2212 = vmul.f32 %v2196, %v2196
        %v2213 = vadd.f32 %v2197, %v2198
        %v2214 = vadd.f32 %v2213, %v2199
        %v2215 = vadd.f32 %v2214, %v2200
        %v2216 = vadd.f32 %v2215, %v2201
        %v2217 = vadd.f32 %v2216, %v2202
        %v2218 = vadd.f32 %v2217, %v2203
        %v2219 = vadd.f32 %v2218, %v2204
        %v2220 = vadd.f32 %v2219, %v2205
        %v2221 = vadd.f32 %v2220, %v2206
        %v2222 = vadd.f32 %v2221, %v2207
        %v2223 = vadd.f32 %v2222, %v2208
        %v2224 = vadd.f32 %v2223, %v2209
        %v2225 = vadd.f32 %v2224, %v2210
        %v2226 = vadd.f32 %v2225, %v2211
        %v2227 = vadd.f32 %v2226, %v2212
        %v2228 = vrot.slane %v2227, 4
        %v2229 = vadd.f32 %v2227, %v2228
        %v2230 = vrot.slane %v2229, 2
        %v2231 = vadd.f32 %v2229, %v2230
        %v2232 = vrot.slane %v2231, 1
        %v2233 = vadd.f32 %v2231, %v2232
        %vm2234 = vcmask 1040384
        %v2235 = vsel %vm2234, %v2179, %v2233
        %2236 = vst [vmem:[%s288] sm:$0x3] %v2235
        %s2237 = sand.u32 %s138, 1
        %s2238 = scalar_lea.sflag [#allocation4], %s2237
        %s2239 = sand.u32 %s138, 1
        %s2240 = smul.addr %s2239, 64
        %s2241 = scalar_lea.vmem [#allocation7], %s2240
        %s2242 = sand.u32 %s166, 1
        %s2243 = scalar_lea.sflag [#allocation9], %s2242
        %s2244 = sand.u32 %s166, 1
        %s2245 = smul.addr %s2244, 2
        %s2246 = scalar_lea.vmem [#allocation8], %s2245
        // Predicated region
        $region45: #{tpu_custom_call.1} parent=35 // pred_check
          %p2247 = pneg %p148
        $region46: #{tpu_custom_call.1} parent=35 // pred_check_branch
          %2249 = sbr.rel (%p2247) target = $region48
        $region47: #{tpu_custom_call.1} parent=35 // pred_region
          %s2250 = smul.u32 8, %s32
          %2252 = vsyncadd %s2238, 0
          %s2253 = smul.addr %s2250, 2
          %s2254 = smul.addr %s31, 32
          %s2255 = sadd.s32 %s2253, %s2254
          %s2256 = smul.addr %s2255, 4
          %s2257 = scalar_lea.hbm %s4, %s2256
          %s2258 = sshll.u32 %s2241, 4
          %s2259 = int_to_ptr.vmem [resolvable:$true] %s2258
          %s2260 = sshll.u32 %s2257, 4
          %s2261 = int_to_ptr.hbm [resolvable:$true] %s2260
          %2266 = dma.vmem_to_hbm [thread:$0]  %s2259, 1024, %s2261, %s2238, 64, 64, 4
        $region48: #{tpu_custom_call.1} parent=35 // pred_fallthru
          _
        // Predicated region
        $region49: #{tpu_custom_call.1} parent=35 // pred_check
          %p2267 = pneg %p176
        $region50: #{tpu_custom_call.1} parent=35 // pred_check_branch
          %2269 = sbr.rel (%p2267) target = $region52
        $region51: #{tpu_custom_call.1} parent=35 // pred_region
          %2271 = vsyncadd %s2243, 0
          %s2272 = smul.addr %s31, 2
          %s2273 = sadd.s32 %s32, %s2272
          %s2274 = smul.addr %s2273, 2
          %s2275 = scalar_lea.hbm %s5, %s2274
          %s2277 = sshll.u32 %s2246, 4
          %s2278 = int_to_ptr.vmem [resolvable:$true] %s2277
          %s2279 = sshll.u32 %s2275, 4
          %s2280 = int_to_ptr.hbm [resolvable:$true] %s2279
          %2282 = dma.vmem_to_hbm [thread:$0]  %s2278, 32, %s2280, %s2243
        $region52: #{tpu_custom_call.1} parent=35 // pred_fallthru
          _
      $region36: #{tpu_custom_call.1} parent=5 // pred_fallthru
        _
      %p2283 = scmp.le.s32.totalorder 2, %s22
      // Predicated region
      $region53: #{tpu_custom_call.1} parent=5 // pred_check
        %p2284 = pneg %p2283
      $region54: #{tpu_custom_call.1} parent=5 // pred_check_branch
        %2286 = sbr.rel (%p2284) target = $region56
      $region55: #{tpu_custom_call.1} parent=5 // pred_region
        %s2287 = ssub.s32 %s22, 2
        // Predicated region
        $region57: #{tpu_custom_call.1} parent=55 // pred_check
          %p2288 = pneg %p154
        $region58: #{tpu_custom_call.1} parent=55 // pred_check_branch
          %2290 = sbr.rel (%p2288) target = $region60
        $region59: #{tpu_custom_call.1} parent=55 // pred_region
          %s2291 = sand.u32 %s139, 1
          %s2292 = scalar_lea.sflag [#allocation4], %s2291
          %s2293 = sand.u32 %s139, 1
          %s2294 = smul.addr %s2293, 64
          %s2295 = scalar_lea.vmem [#allocation7], %s2294
          %2297 = dma.done %s2292, 1024
        $region60: #{tpu_custom_call.1} parent=55 // pred_fallthru
          _
        // Predicated region
        $region61: #{tpu_custom_call.1} parent=55 // pred_check
          %p2298 = pneg %p182
        $region62: #{tpu_custom_call.1} parent=55 // pred_check_branch
          %2300 = sbr.rel (%p2298) target = $region64
        $region63: #{tpu_custom_call.1} parent=55 // pred_region
          %s2301 = sand.u32 %s167, 1
          %s2302 = scalar_lea.sflag [#allocation9], %s2301
          %s2303 = sand.u32 %s167, 1
          %s2304 = smul.addr %s2303, 2
          %s2305 = scalar_lea.vmem [#allocation8], %s2304
          %2307 = dma.done %s2302, 32
        $region64: #{tpu_custom_call.1} parent=55 // pred_fallthru
          _
      $region56: #{tpu_custom_call.1} parent=5 // pred_fallthru
        _
    $region6: #{tpu_custom_call.1} parent=1 // loop_footer
      %s26 = sadd.s32 1, %s22
    $region7: #{tpu_custom_call.1} parent=1 // loop_footer_branch
      %21 = sbr.rel target = $region3
    $region8: #{tpu_custom_call.1} parent=1 // loop_exit
      _
    %2308 = vsyncpa [#allocation3], 1
    %s2309 = scalar_lea.sflag [#allocation3], 1
    %2310 = vsyncpa %s2309, 1
    %2311 = vsyncpa [#allocation6], 1
    %2312 = vsyncpa [#allocation4], 1
    %s2313 = scalar_lea.sflag [#allocation4], 1
    %2314 = vsyncpa %s2313, 1
    %2315 = vsyncpa [#allocation9], 1
    %s2316 = scalar_lea.sflag [#allocation9], 1
    %2317 = vsyncpa %s2316, 1

</llo_original>
